<compile_context>
chip_gen: v6e
topology: v6e:2x2x1
jax: 0.10.0
libtpu: 0.0.40
codegen_flags: <defaults>
</compile_context>

<pallas_src>
import functools
import math

import jax
import jax.numpy as jnp
import numpy as np
from jax.experimental import pallas as pl
from jax.experimental.pallas import tpu as pltpu


# --------------------------------------------------------------------------
# log2 tree-doubling circular segment reduction on (Bt, HW) rows.
# --------------------------------------------------------------------------
def _circular_tree_reduce(row, stride, count, combine, length):
    """row: (Bt, length).  Returns r with
         r[b, l] = combine_{g in [0, count)} row[b, (l + g*stride) mod length]
    using O(log2(count)) XLU lane rolls (tree doubling) instead of count-1.
    The binary decomposition of `count` is an exact partition, so this is valid
    for sums as well as maxes."""
    if count <= 1:
        return row
    # power-of-two partial accumulators: accs[k] covers 2**k consecutive offsets
    accs = [row]
    while (1 << len(accs)) <= count:
        span = 1 << (len(accs) - 1)
        prev = accs[-1]
        sh = (-(span * stride)) % length
        accs.append(combine(prev, pltpu.roll(prev, shift=sh, axis=1)))
    # combine the binary digits of `count`
    res = None
    covered = 0
    for k in reversed(range(len(accs))):
        sp = 1 << k
        if covered + sp <= count:
            part = accs[k]
            if covered:
                part = pltpu.roll(part, shift=(-(covered * stride)) % length, axis=1)
            res = part if res is None else combine(res, part)
            covered += sp
    return res


# --------------------------------------------------------------------------
# Fused kernel: stats + gates + apply for Bt batch elements per grid step.
# --------------------------------------------------------------------------
def _md_fused_kernel(x_ref, mix_ref, wc_ref, wh_ref, ww_ref, o_ref, *, H, W):
    """x_ref/o_ref: (Bt, C, H*W) f32 lane-dense slab (Bt batch elements).
    mix_ref : (6,) f32 SMEM = sigmoid(mix) for [h0, h1, w0, w1, c0, c1].
    wc/wh/ww_ref: SMEM 1-D conv taps for the C / H / W gates (static lengths).

    LAYOUT INVARIANT (h gate): v_h / conv_h / g_h are only meaningful at
    segment-start lanes (lane == h*W); the log2 propagation at the end of the
    h-gate block overwrites the garbage at all other lanes.  Do not reorder the
    propagation before the conv or change the (h-major, w-minor) lane layout."""
    Bt, C, HW = x_ref.shape
    inv_three = 1.0 / 3.0

    x = x_ref[...]                                            # (Bt, C, HW)

    # ------------- pooled statistics: one pass over the slab -------------
    s_row = jnp.sum(x, axis=1)                                # (Bt, HW)  sum over C
    m_row = jnp.max(x, axis=1)                                # (Bt, HW)  max over C
    sum_c = jnp.sum(x, axis=2, keepdims=True)                 # (Bt, C, 1) sum over HW
    max_c = jnp.max(x, axis=2, keepdims=True)                 # (Bt, C, 1) max over HW

    lane = jax.lax.broadcasted_iota(jnp.int32, (1, HW), 1)    # (1, HW) lane index
    if W & (W - 1) == 0:
        widx = lane & (W - 1)                                 # lane -> w = lane % W
    else:
        widx = lane - (lane // W) * W

    # ----------------- "w" gate: pool over (C, H) -----------------
    # residue-class (stride W, H terms) reduction, tree-doubled
    ws = _circular_tree_reduce(s_row, W, H, jnp.add, HW)
    wm = _circular_tree_reduce(m_row, W, H, jnp.maximum, HW)
    avg_w = ws * (1.0 / (C * H))
    v_w = 0.5 * (avg_w + wm) + mix_ref[2] * avg_w + mix_ref[3] * wm

    kw = ww_ref.shape[0]
    pw = (kw - 1) // 2
    conv_w = ww_ref[pw] * v_w
    for j in range(kw):
        d = j - pw
        if d == 0:
            continue
        shifted = pltpu.roll(v_w, shift=(-d) % HW, axis=1)    # neighbour w + d
        mask = (widx < W - d) if d > 0 else (widx >= -d)      # zero padding along w
        conv_w = conv_w + ww_ref[j] * jnp.where(mask, shifted, 0.0)
    g_w = jax.nn.sigmoid(conv_w)                              # (Bt, HW), per-lane w gate

    # ----------------- "h" gate: pool over (C, W) -----------------
    # W-wide window (stride 1) reduction, tree-doubled; valid at lanes h*W only
    hs = _circular_tree_reduce(s_row, 1, W, jnp.add, HW)
    hm = _circular_tree_reduce(m_row, 1, W, jnp.maximum, HW)
    avg_h = hs * (1.0 / (C * W))
    v_h = 0.5 * (avg_h + hm) + mix_ref[0] * avg_h + mix_ref[1] * hm

    kh = wh_ref.shape[0]
    ph = (kh - 1) // 2
    conv_h = wh_ref[ph] * v_h
    for j in range(kh):
        d = j - ph
        if d == 0:
            continue
        # neighbour h + d lives d*W lanes away (segment-start to segment-start)
        shifted = pltpu.roll(v_h, shift=(-(d * W)) % HW, axis=1)
        mask = (lane < (H - d) * W) if d > 0 else (lane >= (-d) * W)   # 0 <= h+d < H
        conv_h = conv_h + wh_ref[j] * jnp.where(mask, shifted, 0.0)
    g_h = jax.nn.sigmoid(conv_h)                              # valid at lanes h*W only

    # propagate each segment-start value across its W-wide segment (log2 steps)
    step = 1
    while step < W:
        prev = pltpu.roll(g_h, shift=step, axis=1)            # prev[l] = g_h[l - step]
        g_h = jnp.where(widx >= step, prev, g_h)
        step *= 2                                             # g_h[l] -> gate of h = l // W

    g_hw = g_h + g_w                                          # (Bt, HW)

    # ------------- channel gate + apply (per batch element) -------------
    kc = wc_ref.shape[0]
    pc = (kc - 1) // 2
    sub = jax.lax.broadcasted_iota(jnp.int32, (C, 1), 0)      # channel index column
    cmasks = {}                                               # hoisted across the Bt loop
    for j in range(kc):
        d = j - pc
        if d != 0:
            cmasks[d] = (sub < C - d) if d > 0 else (sub >= -d)

    inv_hw = 1.0 / HW
    for b in range(Bt):
        avg_c = sum_c[b] * inv_hw                             # (C, 1)
        mx_c = max_c[b]                                       # (C, 1)
        v_c = 0.5 * (avg_c + mx_c) + mix_ref[4] * avg_c + mix_ref[5] * mx_c
        conv_c = wc_ref[pc] * v_c
        for j in range(kc):
            d = j - pc
            if d == 0:
                continue
            shifted = pltpu.roll(v_c, shift=(-d) % C, axis=0)  # shifted[c] = v_c[c + d]
            conv_c = conv_c + wc_ref[j] * jnp.where(cmasks[d], shifted, 0.0)
        g_c = jax.nn.sigmoid(conv_c)                          # (C, 1)

        comb = (g_c + g_hw[b:b + 1, :]) * inv_three           # (C,1)+(1,HW) -> (C, HW)
        o_ref[b] = x_ref[b] * comb                            # lane-dense unmasked store


# --------------------------------------------------------------------------
# Wrapper: generation-aware blocking + layout plumbing + pallas_call.
# --------------------------------------------------------------------------
def _vmem_capacity_bytes():
    try:
        return int(pltpu.get_tpu_info().vmem_capacity_bytes)
    except Exception:
        return 64 * 1024 * 1024                               # v7x per-TC VMEM (smallest)


def _pick_block_batches(B, C, HW):
    """How many batch elements to fuse per grid step, sized against this chip's VMEM."""
    slab_bytes = C * HW * 4                                   # one batch element, f32
    vmem_cap = _vmem_capacity_bytes()
    budget = int(vmem_cap * 0.6)                              # headroom for scratch/pipeline
    # in + out slabs, double-buffered by the BlockSpec pipeline
    bt_cap = max(1, budget // (4 * slab_bytes))
    bt = max(1, min(B, 8, bt_cap))                            # 8 fills the 8 sublanes
    return bt, vmem_cap


def mdlayer_forward(x, params):
    B, C, H, W = x.shape
    HW = H * W

    bt, vmem_cap = _pick_block_batches(B, C, HW)
    n_steps = -(-B // bt)                                     # cdiv
    b_pad = n_steps * bt

    x2 = x.astype(jnp.float32).reshape(B, C, HW)              # contiguous NCHW -> free reshape
    if b_pad != B:
        x2 = jnp.pad(x2, ((0, b_pad - B), (0, 0), (0, 0)))    # tail batches masked (sliced off)

    # scalar glue: sigmoid of the 2-way mixing weights for the three gates
    mix = jnp.concatenate([jax.nn.sigmoid(params["mix_h"]),
                           jax.nn.sigmoid(params["mix_w"]),
                           jax.nn.sigmoid(params["mix_c"])]).astype(jnp.float32)   # (6,)

    slab_bytes = C * HW * 4
    vmem_limit = min(int(vmem_cap * 0.9),
                     max(32 * 1024 * 1024, 4 * bt * slab_bytes + (4 << 20)))

    kernel = functools.partial(_md_fused_kernel, H=H, W=W)
    out2 = pl.pallas_call(
        kernel,
        out_shape=jax.ShapeDtypeStruct((b_pad, C, HW), jnp.float32),
        grid=(n_steps,),
        in_specs=[
            pl.BlockSpec((bt, C, HW), lambda i: (i, 0, 0)),             # x slabs (lane-dense)
            pl.BlockSpec(memory_space=pltpu.MemorySpace.SMEM),          # mix (6,)
            pl.BlockSpec(memory_space=pltpu.MemorySpace.SMEM),          # conv taps (C gate)
            pl.BlockSpec(memory_space=pltpu.MemorySpace.SMEM),          # conv taps (H gate)
            pl.BlockSpec(memory_space=pltpu.MemorySpace.SMEM),          # conv taps (W gate)
        ],
        out_specs=pl.BlockSpec((bt, C, HW), lambda i: (i, 0, 0)),
        compiler_params=pltpu.CompilerParams(
            dimension_semantics=("parallel",),                          # steps across TCs
            vmem_limit_bytes=int(vmem_limit)),
    )(x2, mix,
      params["conv_c"].astype(jnp.float32),
      params["conv_h"].astype(jnp.float32),
      params["conv_w"].astype(jnp.float32))

    return out2[:B].reshape(B, C, H, W)


# --------------------------------------------------------------------------
# Pure-JAX reference (mirrors the PyTorch forward) for verification.
# --------------------------------------------------------------------------
def _md_gate_ref(avg, mx, mix_raw, conv_w):
    s = jax.nn.sigmoid(mix_raw)
    v = 0.5 * (avg + mx) + s[0] * avg + s[1] * mx
    k = conv_w.shape[0]
    pad = (k - 1) // 2
    L = v.shape[1]
    vp = jnp.pad(v, ((0, 0), (pad, pad)))
    conv = sum(conv_w[j] * vp[:, j:j + L] for j in range(k))
    return jax.nn.sigmoid(conv)


def mdlayer_ref(x, params):
    g_h = _md_gate_ref(x.mean(axis=(1, 3)), x.max(axis=(1, 3)),
                       params["mix_h"], params["conv_h"])
    g_w = _md_gate_ref(x.mean(axis=(1, 2)), x.max(axis=(1, 2)),
                       params["mix_w"], params["conv_w"])
    g_c = _md_gate_ref(x.mean(axis=(2, 3)), x.max(axis=(2, 3)),
                       params["mix_c"], params["conv_c"])
    return x * (g_c[:, :, None, None] + g_h[:, None, :, None] + g_w[:, None, None, :]) / 3.0


if __name__ == "__main__":
    B, C, H, W = 2, 32, 16, 16

    # MDLayer(inp=C): kernel size for the c_hw gate; h_cw / w_hc use k=3.
    lambd, gamma = 1.5, 1
    temp = round(abs((math.log2(C) - gamma) / lambd))
    kc = temp if temp % 2 else temp - 1

    key = jax.random.PRNGKey(0)
    kx, k1, k2, k3, k4, k5, k6 = jax.random.split(key, 7)
    x = jax.random.normal(kx, (B, C, H, W), dtype=jnp.float32)
    params = {
        "conv_h": jax.random.normal(k1, (3,), dtype=jnp.float32),   # Conv2d(1,1,(1,3)) weight
        "mix_h":  jax.random.uniform(k2, (2,), dtype=jnp.float32),  # nn.Parameter(torch.rand(2))
        "conv_w": jax.random.normal(k3, (3,), dtype=jnp.float32),
        "mix_w":  jax.random.uniform(k4, (2,), dtype=jnp.float32),
        "conv_c": jax.random.normal(k5, (kc,), dtype=jnp.float32),
        "mix_c":  jax.random.uniform(k6, (2,), dtype=jnp.float32),
    }

    out = jax.jit(mdlayer_forward)(x, params)
    out = jax.block_until_ready(out)

    ref = mdlayer_ref(x, params)
    # exact f32 path (no MXU bf16 passes) -> tight tolerance
    np.testing.assert_allclose(np.asarray(out), np.asarray(ref), rtol=5e-5, atol=5e-5)
    print("KERNEL_OK")
</pallas_src>

<mosaic_0001>
module attributes {stable_mosaic.version = 11 : i64} {
  func.func @_md_fused_kernel(%arg0: i32, %arg1: memref<2x32x256xf32, #tpu.memory_space<vmem>>, %arg2: memref<6xf32, #tpu.memory_space<smem>>, %arg3: memref<3xf32, #tpu.memory_space<smem>>, %arg4: memref<3xf32, #tpu.memory_space<smem>>, %arg5: memref<3xf32, #tpu.memory_space<smem>>, %arg6: memref<2x32x256xf32, #tpu.memory_space<vmem>>) attributes {dimension_semantics = [#tpu.dimension_semantics<parallel>], iteration_bounds = array<i64: 1>, scalar_prefetch = 0 : i64, scratch_operands = 0 : i64, tpu.core_type = #tpu.core_type<tc>, window_params = [{transform_indices = @transform_0, window_bounds = array<i64: 2, 32, 256>}, {transform_indices = @transform_1, window_bounds = array<i64: 6>}, {transform_indices = @transform_2, window_bounds = array<i64: 3>}, {transform_indices = @transform_3, window_bounds = array<i64: 3>}, {transform_indices = @transform_4, window_bounds = array<i64: 3>}, {transform_indices = @transform_5, window_bounds = array<i64: 2, 32, 256>}]} {
    %c0 = arith.constant 0 : index
    %c0_0 = arith.constant 0 : index
    %c0_1 = arith.constant 0 : index
    %0 = vector.load %arg1[%c0, %c0_0, %c0_1] : memref<2x32x256xf32, #tpu.memory_space<vmem>>, vector<2x32x256xf32>
    %cst = arith.constant dense<0.000000e+00> : vector<2x256xf32>
    %1 = vector.multi_reduction <add>, %0, %cst [1] : vector<2x32x256xf32> to vector<2x256xf32>
    %cst_2 = arith.constant dense<0xFF800000> : vector<2x256xf32>
    %2 = vector.multi_reduction <maximumf>, %0, %cst_2 [1] : vector<2x32x256xf32> to vector<2x256xf32>
    %cst_3 = arith.constant dense<0.000000e+00> : vector<2x32xf32>
    %3 = vector.multi_reduction <add>, %0, %cst_3 [2] : vector<2x32x256xf32> to vector<2x32xf32>
    %4 = vector.shape_cast %3 : vector<2x32xf32> to vector<2x32x1xf32>
    %cst_4 = arith.constant dense<0xFF800000> : vector<2x32xf32>
    %5 = vector.multi_reduction <maximumf>, %0, %cst_4 [2] : vector<2x32x256xf32> to vector<2x32xf32>
    %6 = vector.shape_cast %5 : vector<2x32xf32> to vector<2x32x1xf32>
    %7 = tpu.iota {dimensions = array<i32: 1>} : vector<1x256xi32>
    %c15_i32 = arith.constant 15 : i32
    %8 = vector.broadcast %c15_i32 : i32 to vector<1x256xi32>
    %9 = arith.andi %7, %8 : vector<1x256xi32>
    %c240_i32 = arith.constant 240 : i32
    %10 = tpu.dynamic_rotate %1 by %c240_i32 dim 1 : vector<2x256xf32>, i32 -> vector<2x256xf32>
    %11 = arith.addf %1, %10 : vector<2x256xf32>
    %c224_i32 = arith.constant 224 : i32
    %12 = tpu.dynamic_rotate %11 by %c224_i32 dim 1 : vector<2x256xf32>, i32 -> vector<2x256xf32>
    %13 = arith.addf %11, %12 : vector<2x256xf32>
    %c192_i32 = arith.constant 192 : i32
    %14 = tpu.dynamic_rotate %13 by %c192_i32 dim 1 : vector<2x256xf32>, i32 -> vector<2x256xf32>
    %15 = arith.addf %13, %14 : vector<2x256xf32>
    %c128_i32 = arith.constant 128 : i32
    %16 = tpu.dynamic_rotate %15 by %c128_i32 dim 1 : vector<2x256xf32>, i32 -> vector<2x256xf32>
    %17 = arith.addf %15, %16 : vector<2x256xf32>
    %c240_i32_5 = arith.constant 240 : i32
    %18 = tpu.dynamic_rotate %2 by %c240_i32_5 dim 1 : vector<2x256xf32>, i32 -> vector<2x256xf32>
    %19 = arith.maximumf %2, %18 : vector<2x256xf32>
    %c224_i32_6 = arith.constant 224 : i32
    %20 = tpu.dynamic_rotate %19 by %c224_i32_6 dim 1 : vector<2x256xf32>, i32 -> vector<2x256xf32>
    %21 = arith.maximumf %19, %20 : vector<2x256xf32>
    %c192_i32_7 = arith.constant 192 : i32
    %22 = tpu.dynamic_rotate %21 by %c192_i32_7 dim 1 : vector<2x256xf32>, i32 -> vector<2x256xf32>
    %23 = arith.maximumf %21, %22 : vector<2x256xf32>
    %c128_i32_8 = arith.constant 128 : i32
    %24 = tpu.dynamic_rotate %23 by %c128_i32_8 dim 1 : vector<2x256xf32>, i32 -> vector<2x256xf32>
    %25 = arith.maximumf %23, %24 : vector<2x256xf32>
    %cst_9 = arith.constant 0.001953125 : f32
    %26 = vector.broadcast %cst_9 : f32 to vector<2x256xf32>
    %27 = arith.mulf %17, %26 : vector<2x256xf32>
    %28 = arith.addf %27, %25 : vector<2x256xf32>
    %cst_10 = arith.constant 5.000000e-01 : f32
    %29 = vector.broadcast %cst_10 : f32 to vector<2x256xf32>
    %30 = arith.mulf %29, %28 : vector<2x256xf32>
    %c2 = arith.constant 2 : index
    %31 = memref.load %arg2[%c2] : memref<6xf32, #tpu.memory_space<smem>>
    %32 = vector.broadcast %31 : f32 to vector<2x256xf32>
    %33 = arith.mulf %32, %27 : vector<2x256xf32>
    %34 = arith.addf %30, %33 : vector<2x256xf32>
    %c3 = arith.constant 3 : index
    %35 = memref.load %arg2[%c3] : memref<6xf32, #tpu.memory_space<smem>>
    %36 = vector.broadcast %35 : f32 to vector<2x256xf32>
    %37 = arith.mulf %36, %25 : vector<2x256xf32>
    %38 = arith.addf %34, %37 : vector<2x256xf32>
    %c1 = arith.constant 1 : index
    %39 = memref.load %arg5[%c1] : memref<3xf32, #tpu.memory_space<smem>>
    %40 = vector.broadcast %39 : f32 to vector<2x256xf32>
    %41 = arith.mulf %40, %38 : vector<2x256xf32>
    %c1_i32 = arith.constant 1 : i32
    %42 = tpu.dynamic_rotate %38 by %c1_i32 dim 1 : vector<2x256xf32>, i32 -> vector<2x256xf32>
    %c1_i32_11 = arith.constant 1 : i32
    %43 = vector.broadcast %c1_i32_11 : i32 to vector<1x256xi32>
    %44 = arith.cmpi sge, %9, %43 : vector<1x256xi32>
    %c0_12 = arith.constant 0 : index
    %45 = memref.load %arg5[%c0_12] : memref<3xf32, #tpu.memory_space<smem>>
    %cst_13 = arith.constant 0.000000e+00 : f32
    %46 = vector.shape_cast %44 : vector<1x256xi1> to vector<1x256xi1>
    %47 = vector.broadcast %46 : vector<1x256xi1> to vector<2x256xi1>
    %48 = vector.broadcast %cst_13 : f32 to vector<2x256xf32>
    %49 = arith.select %47, %42, %48 : vector<2x256xi1>, vector<2x256xf32>
    %50 = vector.broadcast %45 : f32 to vector<2x256xf32>
    %51 = arith.mulf %50, %49 : vector<2x256xf32>
    %52 = arith.addf %41, %51 : vector<2x256xf32>
    %c255_i32 = arith.constant 255 : i32
    %53 = tpu.dynamic_rotate %38 by %c255_i32 dim 1 : vector<2x256xf32>, i32 -> vector<2x256xf32>
    %c15_i32_14 = arith.constant 15 : i32
    %54 = vector.broadcast %c15_i32_14 : i32 to vector<1x256xi32>
    %55 = arith.cmpi slt, %9, %54 : vector<1x256xi32>
    %c2_15 = arith.constant 2 : index
    %56 = memref.load %arg5[%c2_15] : memref<3xf32, #tpu.memory_space<smem>>
    %cst_16 = arith.constant 0.000000e+00 : f32
    %57 = vector.shape_cast %55 : vector<1x256xi1> to vector<1x256xi1>
    %58 = vector.broadcast %57 : vector<1x256xi1> to vector<2x256xi1>
    %59 = vector.broadcast %cst_16 : f32 to vector<2x256xf32>
    %60 = arith.select %58, %53, %59 : vector<2x256xi1>, vector<2x256xf32>
    %61 = vector.broadcast %56 : f32 to vector<2x256xf32>
    %62 = arith.mulf %61, %60 : vector<2x256xf32>
    %63 = arith.addf %52, %62 : vector<2x256xf32>
    %64 = arith.negf %63 : vector<2x256xf32>
    %65 = math.exp %64 : vector<2x256xf32>
    %cst_17 = arith.constant 1.000000e+00 : f32
    %66 = vector.broadcast %cst_17 : f32 to vector<2x256xf32>
    %67 = arith.addf %66, %65 : vector<2x256xf32>
    %68 = arith.divf %66, %67 : vector<2x256xf32>
    %c255_i32_18 = arith.constant 255 : i32
    %69 = tpu.dynamic_rotate %1 by %c255_i32_18 dim 1 : vector<2x256xf32>, i32 -> vector<2x256xf32>
    %70 = arith.addf %1, %69 : vector<2x256xf32>
    %c254_i32 = arith.constant 254 : i32
    %71 = tpu.dynamic_rotate %70 by %c254_i32 dim 1 : vector<2x256xf32>, i32 -> vector<2x256xf32>
    %72 = arith.addf %70, %71 : vector<2x256xf32>
    %c252_i32 = arith.constant 252 : i32
    %73 = tpu.dynamic_rotate %72 by %c252_i32 dim 1 : vector<2x256xf32>, i32 -> vector<2x256xf32>
    %74 = arith.addf %72, %73 : vector<2x256xf32>
    %c248_i32 = arith.constant 248 : i32
    %75 = tpu.dynamic_rotate %74 by %c248_i32 dim 1 : vector<2x256xf32>, i32 -> vector<2x256xf32>
    %76 = arith.addf %74, %75 : vector<2x256xf32>
    %c255_i32_19 = arith.constant 255 : i32
    %77 = tpu.dynamic_rotate %2 by %c255_i32_19 dim 1 : vector<2x256xf32>, i32 -> vector<2x256xf32>
    %78 = arith.maximumf %2, %77 : vector<2x256xf32>
    %c254_i32_20 = arith.constant 254 : i32
    %79 = tpu.dynamic_rotate %78 by %c254_i32_20 dim 1 : vector<2x256xf32>, i32 -> vector<2x256xf32>
    %80 = arith.maximumf %78, %79 : vector<2x256xf32>
    %c252_i32_21 = arith.constant 252 : i32
    %81 = tpu.dynamic_rotate %80 by %c252_i32_21 dim 1 : vector<2x256xf32>, i32 -> vector<2x256xf32>
    %82 = arith.maximumf %80, %81 : vector<2x256xf32>
    %c248_i32_22 = arith.constant 248 : i32
    %83 = tpu.dynamic_rotate %82 by %c248_i32_22 dim 1 : vector<2x256xf32>, i32 -> vector<2x256xf32>
    %84 = arith.maximumf %82, %83 : vector<2x256xf32>
    %cst_23 = arith.constant 0.001953125 : f32
    %85 = vector.broadcast %cst_23 : f32 to vector<2x256xf32>
    %86 = arith.mulf %76, %85 : vector<2x256xf32>
    %87 = arith.addf %86, %84 : vector<2x256xf32>
    %cst_24 = arith.constant 5.000000e-01 : f32
    %88 = vector.broadcast %cst_24 : f32 to vector<2x256xf32>
    %89 = arith.mulf %88, %87 : vector<2x256xf32>
    %c0_25 = arith.constant 0 : index
    %90 = memref.load %arg2[%c0_25] : memref<6xf32, #tpu.memory_space<smem>>
    %91 = vector.broadcast %90 : f32 to vector<2x256xf32>
    %92 = arith.mulf %91, %86 : vector<2x256xf32>
    %93 = arith.addf %89, %92 : vector<2x256xf32>
    %c1_26 = arith.constant 1 : index
    %94 = memref.load %arg2[%c1_26] : memref<6xf32, #tpu.memory_space<smem>>
    %95 = vector.broadcast %94 : f32 to vector<2x256xf32>
    %96 = arith.mulf %95, %84 : vector<2x256xf32>
    %97 = arith.addf %93, %96 : vector<2x256xf32>
    %c1_27 = arith.constant 1 : index
    %98 = memref.load %arg4[%c1_27] : memref<3xf32, #tpu.memory_space<smem>>
    %99 = vector.broadcast %98 : f32 to vector<2x256xf32>
    %100 = arith.mulf %99, %97 : vector<2x256xf32>
    %c16_i32 = arith.constant 16 : i32
    %101 = tpu.dynamic_rotate %97 by %c16_i32 dim 1 : vector<2x256xf32>, i32 -> vector<2x256xf32>
    %c16_i32_28 = arith.constant 16 : i32
    %102 = vector.broadcast %c16_i32_28 : i32 to vector<1x256xi32>
    %103 = arith.cmpi sge, %7, %102 : vector<1x256xi32>
    %c0_29 = arith.constant 0 : index
    %104 = memref.load %arg4[%c0_29] : memref<3xf32, #tpu.memory_space<smem>>
    %cst_30 = arith.constant 0.000000e+00 : f32
    %105 = vector.shape_cast %103 : vector<1x256xi1> to vector<1x256xi1>
    %106 = vector.broadcast %105 : vector<1x256xi1> to vector<2x256xi1>
    %107 = vector.broadcast %cst_30 : f32 to vector<2x256xf32>
    %108 = arith.select %106, %101, %107 : vector<2x256xi1>, vector<2x256xf32>
    %109 = vector.broadcast %104 : f32 to vector<2x256xf32>
    %110 = arith.mulf %109, %108 : vector<2x256xf32>
    %111 = arith.addf %100, %110 : vector<2x256xf32>
    %c240_i32_31 = arith.constant 240 : i32
    %112 = tpu.dynamic_rotate %97 by %c240_i32_31 dim 1 : vector<2x256xf32>, i32 -> vector<2x256xf32>
    %c240_i32_32 = arith.constant 240 : i32
    %113 = vector.broadcast %c240_i32_32 : i32 to vector<1x256xi32>
    %114 = arith.cmpi slt, %7, %113 : vector<1x256xi32>
    %c2_33 = arith.constant 2 : index
    %115 = memref.load %arg4[%c2_33] : memref<3xf32, #tpu.memory_space<smem>>
    %cst_34 = arith.constant 0.000000e+00 : f32
    %116 = vector.shape_cast %114 : vector<1x256xi1> to vector<1x256xi1>
    %117 = vector.broadcast %116 : vector<1x256xi1> to vector<2x256xi1>
    %118 = vector.broadcast %cst_34 : f32 to vector<2x256xf32>
    %119 = arith.select %117, %112, %118 : vector<2x256xi1>, vector<2x256xf32>
    %120 = vector.broadcast %115 : f32 to vector<2x256xf32>
    %121 = arith.mulf %120, %119 : vector<2x256xf32>
    %122 = arith.addf %111, %121 : vector<2x256xf32>
    %123 = arith.negf %122 : vector<2x256xf32>
    %124 = math.exp %123 : vector<2x256xf32>
    %cst_35 = arith.constant 1.000000e+00 : f32
    %125 = vector.broadcast %cst_35 : f32 to vector<2x256xf32>
    %126 = arith.addf %125, %124 : vector<2x256xf32>
    %127 = arith.divf %125, %126 : vector<2x256xf32>
    %c1_i32_36 = arith.constant 1 : i32
    %128 = tpu.dynamic_rotate %127 by %c1_i32_36 dim 1 : vector<2x256xf32>, i32 -> vector<2x256xf32>
    %c1_i32_37 = arith.constant 1 : i32
    %129 = vector.broadcast %c1_i32_37 : i32 to vector<1x256xi32>
    %130 = arith.cmpi sge, %9, %129 : vector<1x256xi32>
    %131 = vector.shape_cast %130 : vector<1x256xi1> to vector<1x256xi1>
    %132 = vector.broadcast %131 : vector<1x256xi1> to vector<2x256xi1>
    %133 = arith.select %132, %128, %127 : vector<2x256xi1>, vector<2x256xf32>
    %c2_i32 = arith.constant 2 : i32
    %134 = tpu.dynamic_rotate %133 by %c2_i32 dim 1 : vector<2x256xf32>, i32 -> vector<2x256xf32>
    %c2_i32_38 = arith.constant 2 : i32
    %135 = vector.broadcast %c2_i32_38 : i32 to vector<1x256xi32>
    %136 = arith.cmpi sge, %9, %135 : vector<1x256xi32>
    %137 = vector.shape_cast %136 : vector<1x256xi1> to vector<1x256xi1>
    %138 = vector.broadcast %137 : vector<1x256xi1> to vector<2x256xi1>
    %139 = arith.select %138, %134, %133 : vector<2x256xi1>, vector<2x256xf32>
    %c4_i32 = arith.constant 4 : i32
    %140 = tpu.dynamic_rotate %139 by %c4_i32 dim 1 : vector<2x256xf32>, i32 -> vector<2x256xf32>
    %c4_i32_39 = arith.constant 4 : i32
    %141 = vector.broadcast %c4_i32_39 : i32 to vector<1x256xi32>
    %142 = arith.cmpi sge, %9, %141 : vector<1x256xi32>
    %143 = vector.shape_cast %142 : vector<1x256xi1> to vector<1x256xi1>
    %144 = vector.broadcast %143 : vector<1x256xi1> to vector<2x256xi1>
    %145 = arith.select %144, %140, %139 : vector<2x256xi1>, vector<2x256xf32>
    %c8_i32 = arith.constant 8 : i32
    %146 = tpu.dynamic_rotate %145 by %c8_i32 dim 1 : vector<2x256xf32>, i32 -> vector<2x256xf32>
    %c8_i32_40 = arith.constant 8 : i32
    %147 = vector.broadcast %c8_i32_40 : i32 to vector<1x256xi32>
    %148 = arith.cmpi sge, %9, %147 : vector<1x256xi32>
    %149 = vector.shape_cast %148 : vector<1x256xi1> to vector<1x256xi1>
    %150 = vector.broadcast %149 : vector<1x256xi1> to vector<2x256xi1>
    %151 = arith.select %150, %146, %145 : vector<2x256xi1>, vector<2x256xf32>
    %152 = arith.addf %151, %68 : vector<2x256xf32>
    %153 = tpu.iota {dimensions = array<i32: 0>} : vector<32x1xi32>
    %c1_i32_41 = arith.constant 1 : i32
    %154 = vector.broadcast %c1_i32_41 : i32 to vector<32x1xi32>
    %155 = arith.cmpi sge, %153, %154 : vector<32x1xi32>
    %c31_i32 = arith.constant 31 : i32
    %156 = vector.broadcast %c31_i32 : i32 to vector<32x1xi32>
    %157 = arith.cmpi slt, %153, %156 : vector<32x1xi32>
    %158 = vector.extract_strided_slice %4 {offsets = [0, 0, 0], sizes = [1, 32, 1], strides = [1, 1, 1]} : vector<2x32x1xf32> to vector<1x32x1xf32>
    %159 = vector.shape_cast %158 : vector<1x32x1xf32> to vector<32x1xf32>
    %cst_42 = arith.constant 3.906250e-03 : f32
    %160 = vector.broadcast %cst_42 : f32 to vector<32x1xf32>
    %161 = arith.mulf %159, %160 : vector<32x1xf32>
    %162 = vector.extract_strided_slice %6 {offsets = [0, 0, 0], sizes = [1, 32, 1], strides = [1, 1, 1]} : vector<2x32x1xf32> to vector<1x32x1xf32>
    %163 = vector.shape_cast %162 : vector<1x32x1xf32> to vector<32x1xf32>
    %164 = arith.addf %161, %163 : vector<32x1xf32>
    %cst_43 = arith.constant 5.000000e-01 : f32
    %165 = vector.broadcast %cst_43 : f32 to vector<32x1xf32>
    %166 = arith.mulf %165, %164 : vector<32x1xf32>
    %c4 = arith.constant 4 : index
    %167 = memref.load %arg2[%c4] : memref<6xf32, #tpu.memory_space<smem>>
    %168 = vector.broadcast %167 : f32 to vector<32x1xf32>
    %169 = arith.mulf %168, %161 : vector<32x1xf32>
    %170 = arith.addf %166, %169 : vector<32x1xf32>
    %c5 = arith.constant 5 : index
    %171 = memref.load %arg2[%c5] : memref<6xf32, #tpu.memory_space<smem>>
    %172 = vector.broadcast %171 : f32 to vector<32x1xf32>
    %173 = arith.mulf %172, %163 : vector<32x1xf32>
    %174 = arith.addf %170, %173 : vector<32x1xf32>
    %c1_44 = arith.constant 1 : index
    %175 = memref.load %arg3[%c1_44] : memref<3xf32, #tpu.memory_space<smem>>
    %176 = vector.broadcast %175 : f32 to vector<32x1xf32>
    %177 = arith.mulf %176, %174 : vector<32x1xf32>
    %c1_i32_45 = arith.constant 1 : i32
    %178 = tpu.dynamic_rotate %174 by %c1_i32_45 dim 0 : vector<32x1xf32>, i32 -> vector<32x1xf32>
    %c0_46 = arith.constant 0 : index
    %179 = memref.load %arg3[%c0_46] : memref<3xf32, #tpu.memory_space<smem>>
    %cst_47 = arith.constant 0.000000e+00 : f32
    %180 = vector.broadcast %cst_47 : f32 to vector<32x1xf32>
    %181 = arith.select %155, %178, %180 : vector<32x1xi1>, vector<32x1xf32>
    %182 = vector.broadcast %179 : f32 to vector<32x1xf32>
    %183 = arith.mulf %182, %181 : vector<32x1xf32>
    %184 = arith.addf %177, %183 : vector<32x1xf32>
    %c31_i32_48 = arith.constant 31 : i32
    %185 = tpu.dynamic_rotate %174 by %c31_i32_48 dim 0 : vector<32x1xf32>, i32 -> vector<32x1xf32>
    %c2_49 = arith.constant 2 : index
    %186 = memref.load %arg3[%c2_49] : memref<3xf32, #tpu.memory_space<smem>>
    %cst_50 = arith.constant 0.000000e+00 : f32
    %187 = vector.broadcast %cst_50 : f32 to vector<32x1xf32>
    %188 = arith.select %157, %185, %187 : vector<32x1xi1>, vector<32x1xf32>
    %189 = vector.broadcast %186 : f32 to vector<32x1xf32>
    %190 = arith.mulf %189, %188 : vector<32x1xf32>
    %191 = arith.addf %184, %190 : vector<32x1xf32>
    %192 = arith.negf %191 : vector<32x1xf32>
    %193 = math.exp %192 : vector<32x1xf32>
    %cst_51 = arith.constant 1.000000e+00 : f32
    %194 = vector.broadcast %cst_51 : f32 to vector<32x1xf32>
    %195 = arith.addf %194, %193 : vector<32x1xf32>
    %196 = arith.divf %194, %195 : vector<32x1xf32>
    %197 = vector.extract_strided_slice %152 {offsets = [0, 0], sizes = [1, 256], strides = [1, 1]} : vector<2x256xf32> to vector<1x256xf32>
    %198 = vector.broadcast %196 : vector<32x1xf32> to vector<32x256xf32>
    %199 = vector.broadcast %197 : vector<1x256xf32> to vector<32x256xf32>
    %200 = arith.addf %198, %199 : vector<32x256xf32>
    %cst_52 = arith.constant 0.333333343 : f32
    %201 = vector.broadcast %cst_52 : f32 to vector<32x256xf32>
    %202 = arith.mulf %200, %201 : vector<32x256xf32>
    %c0_53 = arith.constant 0 : index
    %c0_54 = arith.constant 0 : index
    %c0_55 = arith.constant 0 : index
    %203 = vector.load %arg1[%c0_53, %c0_54, %c0_55] : memref<2x32x256xf32, #tpu.memory_space<vmem>>, vector<1x32x256xf32>
    %204 = vector.shape_cast %203 : vector<1x32x256xf32> to vector<32x256xf32>
    %205 = arith.mulf %204, %202 : vector<32x256xf32>
    %c0_56 = arith.constant 0 : index
    %c0_57 = arith.constant 0 : index
    %c0_58 = arith.constant 0 : index
    %206 = vector.load %arg6[%c0_56, %c0_57, %c0_58] : memref<2x32x256xf32, #tpu.memory_space<vmem>>, vector<1x32x256xf32>
    %207 = vector.shape_cast %206 : vector<1x32x256xf32> to vector<32x256xf32>
    %208 = vector.shape_cast %205 : vector<32x256xf32> to vector<1x32x256xf32>
    tpu.vector_store %arg6[%c0_56, %c0_57, %c0_58], %208 {strides = array<i32>} : memref<2x32x256xf32, #tpu.memory_space<vmem>>, vector<1x32x256xf32>,
    %209 = vector.extract_strided_slice %4 {offsets = [1, 0, 0], sizes = [1, 32, 1], strides = [1, 1, 1]} : vector<2x32x1xf32> to vector<1x32x1xf32>
    %210 = vector.shape_cast %209 : vector<1x32x1xf32> to vector<32x1xf32>
    %cst_59 = arith.constant 3.906250e-03 : f32
    %211 = vector.broadcast %cst_59 : f32 to vector<32x1xf32>
    %212 = arith.mulf %210, %211 : vector<32x1xf32>
    %213 = vector.extract_strided_slice %6 {offsets = [1, 0, 0], sizes = [1, 32, 1], strides = [1, 1, 1]} : vector<2x32x1xf32> to vector<1x32x1xf32>
    %214 = vector.shape_cast %213 : vector<1x32x1xf32> to vector<32x1xf32>
    %215 = arith.addf %212, %214 : vector<32x1xf32>
    %cst_60 = arith.constant 5.000000e-01 : f32
    %216 = vector.broadcast %cst_60 : f32 to vector<32x1xf32>
    %217 = arith.mulf %216, %215 : vector<32x1xf32>
    %c4_61 = arith.constant 4 : index
    %218 = memref.load %arg2[%c4_61] : memref<6xf32, #tpu.memory_space<smem>>
    %219 = vector.broadcast %218 : f32 to vector<32x1xf32>
    %220 = arith.mulf %219, %212 : vector<32x1xf32>
    %221 = arith.addf %217, %220 : vector<32x1xf32>
    %c5_62 = arith.constant 5 : index
    %222 = memref.load %arg2[%c5_62] : memref<6xf32, #tpu.memory_space<smem>>
    %223 = vector.broadcast %222 : f32 to vector<32x1xf32>
    %224 = arith.mulf %223, %214 : vector<32x1xf32>
    %225 = arith.addf %221, %224 : vector<32x1xf32>
    %c1_63 = arith.constant 1 : index
    %226 = memref.load %arg3[%c1_63] : memref<3xf32, #tpu.memory_space<smem>>
    %227 = vector.broadcast %226 : f32 to vector<32x1xf32>
    %228 = arith.mulf %227, %225 : vector<32x1xf32>
    %c1_i32_64 = arith.constant 1 : i32
    %229 = tpu.dynamic_rotate %225 by %c1_i32_64 dim 0 : vector<32x1xf32>, i32 -> vector<32x1xf32>
    %c0_65 = arith.constant 0 : index
    %230 = memref.load %arg3[%c0_65] : memref<3xf32, #tpu.memory_space<smem>>
    %cst_66 = arith.constant 0.000000e+00 : f32
    %231 = vector.broadcast %cst_66 : f32 to vector<32x1xf32>
    %232 = arith.select %155, %229, %231 : vector<32x1xi1>, vector<32x1xf32>
    %233 = vector.broadcast %230 : f32 to vector<32x1xf32>
    %234 = arith.mulf %233, %232 : vector<32x1xf32>
    %235 = arith.addf %228, %234 : vector<32x1xf32>
    %c31_i32_67 = arith.constant 31 : i32
    %236 = tpu.dynamic_rotate %225 by %c31_i32_67 dim 0 : vector<32x1xf32>, i32 -> vector<32x1xf32>
    %c2_68 = arith.constant 2 : index
    %237 = memref.load %arg3[%c2_68] : memref<3xf32, #tpu.memory_space<smem>>
    %cst_69 = arith.constant 0.000000e+00 : f32
    %238 = vector.broadcast %cst_69 : f32 to vector<32x1xf32>
    %239 = arith.select %157, %236, %238 : vector<32x1xi1>, vector<32x1xf32>
    %240 = vector.broadcast %237 : f32 to vector<32x1xf32>
    %241 = arith.mulf %240, %239 : vector<32x1xf32>
    %242 = arith.addf %235, %241 : vector<32x1xf32>
    %243 = arith.negf %242 : vector<32x1xf32>
    %244 = math.exp %243 : vector<32x1xf32>
    %cst_70 = arith.constant 1.000000e+00 : f32
    %245 = vector.broadcast %cst_70 : f32 to vector<32x1xf32>
    %246 = arith.addf %245, %244 : vector<32x1xf32>
    %247 = arith.divf %245, %246 : vector<32x1xf32>
    %248 = vector.extract_strided_slice %152 {offsets = [1, 0], sizes = [1, 256], strides = [1, 1]} : vector<2x256xf32> to vector<1x256xf32>
    %249 = vector.broadcast %247 : vector<32x1xf32> to vector<32x256xf32>
    %250 = vector.broadcast %248 : vector<1x256xf32> to vector<32x256xf32>
    %251 = arith.addf %249, %250 : vector<32x256xf32>
    %cst_71 = arith.constant 0.333333343 : f32
    %252 = vector.broadcast %cst_71 : f32 to vector<32x256xf32>
    %253 = arith.mulf %251, %252 : vector<32x256xf32>
    %c1_72 = arith.constant 1 : index
    %c0_73 = arith.constant 0 : index
    %c0_74 = arith.constant 0 : index
    %254 = vector.load %arg1[%c1_72, %c0_73, %c0_74] : memref<2x32x256xf32, #tpu.memory_space<vmem>>, vector<1x32x256xf32>
    %255 = vector.shape_cast %254 : vector<1x32x256xf32> to vector<32x256xf32>
    %256 = arith.mulf %255, %253 : vector<32x256xf32>
    %c1_75 = arith.constant 1 : index
    %c0_76 = arith.constant 0 : index
    %c0_77 = arith.constant 0 : index
    %257 = vector.load %arg6[%c1_75, %c0_76, %c0_77] : memref<2x32x256xf32, #tpu.memory_space<vmem>>, vector<1x32x256xf32>
    %258 = vector.shape_cast %257 : vector<1x32x256xf32> to vector<32x256xf32>
    %259 = vector.shape_cast %256 : vector<32x256xf32> to vector<1x32x256xf32>
    tpu.vector_store %arg6[%c1_75, %c0_76, %c0_77], %259 {strides = array<i32>} : memref<2x32x256xf32, #tpu.memory_space<vmem>>, vector<1x32x256xf32>,
    return
  }
  func.func @transform_0(%arg0: i32) -> (i32, i32, i32) {
    %c0_i32 = arith.constant 0 : i32
    %c0_i32_0 = arith.constant 0 : i32
    %c0_i32_1 = arith.constant 0 : i32
    return %arg0, %c0_i32, %c0_i32_0 : i32, i32, i32
  }
  func.func @transform_1(%arg0: i32) -> i32 {
    %c0_i32 = arith.constant 0 : i32
    %c0_i32_0 = arith.constant 0 : i32
    return %c0_i32 : i32
  }
  func.func @transform_2(%arg0: i32) -> i32 {
    %c0_i32 = arith.constant 0 : i32
    %c0_i32_0 = arith.constant 0 : i32
    return %c0_i32 : i32
  }
  func.func @transform_3(%arg0: i32) -> i32 {
    %c0_i32 = arith.constant 0 : i32
    %c0_i32_0 = arith.constant 0 : i32
    return %c0_i32 : i32
  }
  func.func @transform_4(%arg0: i32) -> i32 {
    %c0_i32 = arith.constant 0 : i32
    %c0_i32_0 = arith.constant 0 : i32
    return %c0_i32 : i32
  }
  func.func @transform_5(%arg0: i32) -> (i32, i32, i32) {
    %c0_i32 = arith.constant 0 : i32
    %c0_i32_0 = arith.constant 0 : i32
    %c0_i32_1 = arith.constant 0 : i32
    return %arg0, %c0_i32, %c0_i32_0 : i32, i32, i32
  }
}

</mosaic_0001>

<llo_original>
// kernel: mdlayer_forward.1
$region0: #{mdlayer_forward.1}
  #allocation0 [shape = 'u32[]', space=smem, size = 0x4, offset = 0x4, fixed_abs, tag = 'smem constant byte address 0x4 - core index']
  #allocation1 [shape = 'u32[144,128]{1,0:T(1,128)}', space=vmem, size = 0x12000, scoped, tag = 'internal scratch']
  %s0 = inlined_call_operand.vmem [shape: f32[2,32,256], index: 0, kind: input, shape index: {}]
  %s1 = inlined_call_operand.vmem [shape: f32[6], index: 1, kind: input, shape index: {}]
  %s2 = inlined_call_operand.vmem [shape: f32[3], index: 2, kind: input, shape index: {}]
  %s3 = inlined_call_operand.vmem [shape: f32[3], index: 3, kind: input, shape index: {}]
  %s4 = inlined_call_operand.vmem [shape: f32[3], index: 4, kind: input, shape index: {}]
  %s5 = inlined_call_operand.vmem [shape: f32[2,32,256], index: 5, kind: output, shape index: {}]
  %s6 = sld [smem:[#allocation0]]
  $region46: #{mdlayer_forward.1} parent=0
    _
  %s8 = ssub.s32 1, %s6
  %s9 = scalar_select 0, %s8, %s6
  $region1: #{mdlayer_forward.1} parent=0
    #allocation2 [shape = 'u8[512]{0}', space=smem, size = 0x200, scoped, tag = 'input window, operand 1, single buffered']
    #allocation3 [shape = 's32[1]{0}', space=sflag, size = 0x4, scoped, tag = 'scoped memory for mdlayer_forward.1']
    #allocation4 [shape = 'u8[512]{0}', space=smem, size = 0x200, scoped, tag = 'input window, operand 2, single buffered']
    #allocation5 [shape = 's32[1]{0}', space=sflag, size = 0x4, scoped, tag = 'scoped memory for mdlayer_forward.1']
    #allocation6 [shape = 'u8[512]{0}', space=smem, size = 0x200, scoped, tag = 'input window, operand 3, single buffered']
    #allocation7 [shape = 'u8[512]{0}', space=smem, size = 0x200, scoped, tag = 'input window, operand 4, single buffered']
    #allocation8 [shape = 's32[1]{0}', space=sflag, size = 0x4, scoped, tag = 'scoped memory for mdlayer_forward.1']
    %10 = vsyncpa [#allocation3], 0
    %11 = vsyncpa [#allocation5], 0
    %12 = vsyncpa [#allocation8], 0
    // Predicated region
    $region2: #{mdlayer_forward.1} parent=1 // pred_check
      _
    $region3: #{mdlayer_forward.1} parent=1 // pred_check_branch
      %14 = sbr.rel (0) target = $region5
    $region4: #{mdlayer_forward.1} parent=1 // pred_region
      _
    $region5: #{mdlayer_forward.1} parent=1 // pred_fallthru
      _
    // Predicated region
    $region6: #{mdlayer_forward.1} parent=1 // pred_check
      _
    $region7: #{mdlayer_forward.1} parent=1 // pred_check_branch
      %16 = sbr.rel (0) target = $region9
    $region8: #{mdlayer_forward.1} parent=1 // pred_region
      %s18 = ssub.s32 16, 16
      %19 = vsyncadd [#allocation3], %s18
      %s21 = sshll.u32 %s1, 4
      %s22 = int_to_ptr.vmem [resolvable:$true] %s21
      %24 = dma.vmem_to_smem %s22, 16, [#allocation2], [#allocation3]
    $region9: #{mdlayer_forward.1} parent=1 // pred_fallthru
      _
    // Predicated region
    $region10: #{mdlayer_forward.1} parent=1 // pred_check
      _
    $region11: #{mdlayer_forward.1} parent=1 // pred_check_branch
      %26 = sbr.rel (0) target = $region13
    $region12: #{mdlayer_forward.1} parent=1 // pred_region
      %s28 = ssub.s32 16, 16
      %29 = vsyncadd [#allocation5], %s28
      %s31 = sshll.u32 %s2, 4
      %s32 = int_to_ptr.vmem [resolvable:$true] %s31
      %34 = dma.vmem_to_smem %s32, 16, [#allocation4], [#allocation5]
    $region13: #{mdlayer_forward.1} parent=1 // pred_fallthru
      _
    // Predicated region
    $region14: #{mdlayer_forward.1} parent=1 // pred_check
      _
    $region15: #{mdlayer_forward.1} parent=1 // pred_check_branch
      %36 = sbr.rel (0) target = $region17
    $region16: #{mdlayer_forward.1} parent=1 // pred_region
      %s38 = ssub.s32 16, 16
      %39 = vsyncadd [#allocation5], %s38
      %s41 = sshll.u32 %s3, 4
      %s42 = int_to_ptr.vmem [resolvable:$true] %s41
      %44 = dma.vmem_to_smem %s42, 16, [#allocation6], [#allocation5]
    $region17: #{mdlayer_forward.1} parent=1 // pred_fallthru
      _
    // Predicated region
    $region18: #{mdlayer_forward.1} parent=1 // pred_check
      _
    $region19: #{mdlayer_forward.1} parent=1 // pred_check_branch
      %46 = sbr.rel (0) target = $region21
    $region20: #{mdlayer_forward.1} parent=1 // pred_region
      %s48 = ssub.s32 16, 16
      %49 = vsyncadd [#allocation8], %s48
      %s51 = sshll.u32 %s4, 4
      %s52 = int_to_ptr.vmem [resolvable:$true] %s51
      %54 = dma.vmem_to_smem %s52, 16, [#allocation7], [#allocation8]
    $region21: #{mdlayer_forward.1} parent=1 // pred_fallthru
      _
    // Predicated region
    $region22: #{mdlayer_forward.1} parent=1 // pred_check
      _
    $region23: #{mdlayer_forward.1} parent=1 // pred_check_branch
      %56 = sbr.rel (0) target = $region25
    $region24: #{mdlayer_forward.1} parent=1 // pred_region
      %57 = dma.done [#allocation3], 16
    $region25: #{mdlayer_forward.1} parent=1 // pred_fallthru
      _
    // Predicated region
    $region26: #{mdlayer_forward.1} parent=1 // pred_check
      _
    $region27: #{mdlayer_forward.1} parent=1 // pred_check_branch
      %59 = sbr.rel (0) target = $region29
    $region28: #{mdlayer_forward.1} parent=1 // pred_region
      %60 = dma.done [#allocation5], 16
    $region29: #{mdlayer_forward.1} parent=1 // pred_fallthru
      _
    // Predicated region
    $region30: #{mdlayer_forward.1} parent=1 // pred_check
      _
    $region31: #{mdlayer_forward.1} parent=1 // pred_check_branch
      %62 = sbr.rel (0) target = $region33
    $region32: #{mdlayer_forward.1} parent=1 // pred_region
      %63 = dma.done [#allocation5], 16
    $region33: #{mdlayer_forward.1} parent=1 // pred_fallthru
      _
    // Predicated region
    $region34: #{mdlayer_forward.1} parent=1 // pred_check
      _
    $region35: #{mdlayer_forward.1} parent=1 // pred_check_branch
      %65 = sbr.rel (0) target = $region37
    $region36: #{mdlayer_forward.1} parent=1 // pred_region
      %66 = dma.done [#allocation8], 16
    $region37: #{mdlayer_forward.1} parent=1 // pred_fallthru
      _
    %67 = sfence
    %v68 = vld [vmem:[%s0] sm:$0xff]
    %v69 = vld [vmem:[%s0 + $0x8] sm:$0xff]
    %v70 = vld [vmem:[%s0 + $0x10] sm:$0xff]
    %v71 = vld [vmem:[%s0 + $0x18] sm:$0xff]
    %v72 = vld [vmem:[%s0 + $0x20] sm:$0xff]
    %v73 = vld [vmem:[%s0 + $0x28] sm:$0xff]
    %v74 = vld [vmem:[%s0 + $0x30] sm:$0xff]
    %v75 = vld [vmem:[%s0 + $0x38] sm:$0xff]
    %v76 = vld [vmem:[%s0 + $0x40] sm:$0xff]
    %v77 = vld [vmem:[%s0 + $0x48] sm:$0xff]
    %v78 = vld [vmem:[%s0 + $0x50] sm:$0xff]
    %v79 = vld [vmem:[%s0 + $0x58] sm:$0xff]
    %v80 = vld [vmem:[%s0 + $0x60] sm:$0xff]
    %v81 = vld [vmem:[%s0 + $0x68] sm:$0xff]
    %v82 = vld [vmem:[%s0 + $0x70] sm:$0xff]
    %v83 = vld [vmem:[%s0 + $0x78] sm:$0xff]
    %v84 = vadd.f32 %v68, %v70
    %v85 = vadd.f32 %v84, %v72
    %v86 = vadd.f32 %v85, %v74
    %v87 = vrot.slane %v86, 4
    %v88 = vadd.f32 %v86, %v87
    %v89 = vrot.slane %v88, 2
    %v90 = vadd.f32 %v88, %v89
    %v91 = vrot.slane %v90, 1
    %v92 = vadd.f32 %v90, %v91
    %v93 = vadd.f32 %v69, %v71
    %v94 = vadd.f32 %v93, %v73
    %v95 = vadd.f32 %v94, %v75
    %v96 = vrot.slane %v95, 4
    %v97 = vadd.f32 %v95, %v96
    %v98 = vrot.slane %v97, 2
    %v99 = vadd.f32 %v97, %v98
    %v100 = vrot.slane %v99, 1
    %v101 = vadd.f32 %v99, %v100
    %v102 = vadd.f32 %v76, %v78
    %v103 = vadd.f32 %v102, %v80
    %v104 = vadd.f32 %v103, %v82
    %v105 = vrot.slane %v104, 4
    %v106 = vadd.f32 %v104, %v105
    %v107 = vrot.slane %v106, 2
    %v108 = vadd.f32 %v106, %v107
    %v109 = vrot.slane %v108, 1
    %v110 = vadd.f32 %v108, %v109
    %v111 = vadd.f32 %v77, %v79
    %v112 = vadd.f32 %v111, %v81
    %v113 = vadd.f32 %v112, %v83
    %v114 = vrot.slane %v113, 4
    %v115 = vadd.f32 %v113, %v114
    %v116 = vrot.slane %v115, 2
    %v117 = vadd.f32 %v115, %v116
    %v118 = vrot.slane %v117, 1
    %v119 = vadd.f32 %v117, %v118
    %v120 = vmax.f32 %v68, %v70
    %v121 = vmax.f32 %v120, %v72
    %v122 = vmax.f32 %v121, %v74
    %v123 = vrot.slane %v122, 4
    %v124 = vmax.f32 %v122, %v123
    %v125 = vrot.slane %v124, 2
    %v126 = vmax.f32 %v124, %v125
    %v127 = vrot.slane %v126, 1
    %v128 = vmax.f32 %v126, %v127
    %v129 = vmax.f32 %v69, %v71
    %v130 = vmax.f32 %v129, %v73
    %v131 = vmax.f32 %v130, %v75
    %v132 = vrot.slane %v131, 4
    %v133 = vmax.f32 %v131, %v132
    %v134 = vrot.slane %v133, 2
    %v135 = vmax.f32 %v133, %v134
    %v136 = vrot.slane %v135, 1
    %v137 = vmax.f32 %v135, %v136
    %v138 = vmax.f32 %v76, %v78
    %v139 = vmax.f32 %v138, %v80
    %v140 = vmax.f32 %v139, %v82
    %v141 = vrot.slane %v140, 4
    %v142 = vmax.f32 %v140, %v141
    %v143 = vrot.slane %v142, 2
    %v144 = vmax.f32 %v142, %v143
    %v145 = vrot.slane %v144, 1
    %v146 = vmax.f32 %v144, %v145
    %v147 = vmax.f32 %v77, %v79
    %v148 = vmax.f32 %v147, %v81
    %v149 = vmax.f32 %v148, %v83
    %v150 = vrot.slane %v149, 4
    %v151 = vmax.f32 %v149, %v150
    %v152 = vrot.slane %v151, 2
    %v153 = vmax.f32 %v151, %v152
    %v154 = vrot.slane %v153, 1
    %v155 = vmax.f32 %v153, %v154
    %v156 = vadd.f32 %v68, %v69
    %157 = vadd.xlane.f32.xlu0 %v156
    %v158 = vpop.xlane.xlu0 %157
    %v159 = vadd.f32 %v70, %v71
    %160 = vadd.xlane.f32.xlu0 %v159
    %v161 = vpop.xlane.xlu0 %160
    %v162 = vadd.f32 %v72, %v73
    %163 = vadd.xlane.f32.xlu0 %v162
    %v164 = vpop.xlane.xlu0 %163
    %v165 = vadd.f32 %v74, %v75
    %166 = vadd.xlane.f32.xlu0 %v165
    %v167 = vpop.xlane.xlu0 %166
    %v168 = vadd.f32 %v76, %v77
    %169 = vadd.xlane.f32.xlu0 %v168
    %v170 = vpop.xlane.xlu0 %169
    %v171 = vadd.f32 %v78, %v79
    %172 = vadd.xlane.f32.xlu0 %v171
    %v173 = vpop.xlane.xlu0 %172
    %v174 = vadd.f32 %v80, %v81
    %175 = vadd.xlane.f32.xlu0 %v174
    %v176 = vpop.xlane.xlu0 %175
    %v177 = vadd.f32 %v82, %v83
    %178 = vadd.xlane.f32.xlu0 %v177
    %v179 = vpop.xlane.xlu0 %178
    %v180 = vmax.f32 %v68, %v69
    %181 = vmax.xlane.f32.xlu0 %v180
    %v182 = vpop.xlane.xlu0 %181
    %v183 = vmax.f32 %v70, %v71
    %184 = vmax.xlane.f32.xlu0 %v183
    %v185 = vpop.xlane.xlu0 %184
    %v186 = vmax.f32 %v72, %v73
    %187 = vmax.xlane.f32.xlu0 %v186
    %v188 = vpop.xlane.xlu0 %187
    %v189 = vmax.f32 %v74, %v75
    %190 = vmax.xlane.f32.xlu0 %v189
    %v191 = vpop.xlane.xlu0 %190
    %v192 = vmax.f32 %v76, %v77
    %193 = vmax.xlane.f32.xlu0 %v192
    %v194 = vpop.xlane.xlu0 %193
    %v195 = vmax.f32 %v78, %v79
    %196 = vmax.xlane.f32.xlu0 %v195
    %v197 = vpop.xlane.xlu0 %196
    %v198 = vmax.f32 %v80, %v81
    %199 = vmax.xlane.f32.xlu0 %v198
    %v200 = vpop.xlane.xlu0 %199
    %v201 = vmax.f32 %v82, %v83
    %202 = vmax.xlane.f32.xlu0 %v201
    %v203 = vpop.xlane.xlu0 %202
    %v204 = vlaneseq
    %v205 = vand.u32 %v204, 127
    %v206 = vadd.s32 %v205, 128
    %v207 = vand.u32 %v205, 15
    %v208 = vand.u32 %v206, 15
    %vm213 = vcmask 1041409
    %v214 = vsel %vm213, %v110, %v92
    %v215 = vsel %vm213, %v119, %v101
    %218 = vrot.lane.b32.xlu0 %v214, 112
    %v219 = vpop.permute.xlu0 %218
    %220 = vrot.lane.b32.xlu0 %v215, 112
    %v221 = vpop.permute.xlu0 %220
    %vm222 = vcmp.lt.s32.totalorder %v205, 112
    %v223 = vsel %vm222, %v219, %v221
    %v224 = vsel %vm222, %v221, %v219
    %v227 = vrot.slane %v223, 1
    %v228 = vrot.slane %v224, 1
    %v233 = vadd.f32 %v92, %v223
    %v234 = vadd.f32 %v101, %v224
    %v235 = vadd.f32 %v110, %v227
    %v236 = vadd.f32 %v119, %v228
    %v241 = vrot.slane %v235, 7
    %v242 = vsel %vm213, %v241, %v233
    %v243 = vrot.slane %v236, 7
    %v244 = vsel %vm213, %v243, %v234
    %247 = vrot.lane.b32.xlu0 %v242, 96
    %v248 = vpop.permute.xlu0 %247
    %249 = vrot.lane.b32.xlu0 %v244, 96
    %v250 = vpop.permute.xlu0 %249
    %vm251 = vcmp.lt.s32.totalorder %v205, 96
    %v252 = vsel %vm251, %v248, %v250
    %v253 = vsel %vm251, %v250, %v248
    %v256 = vrot.slane %v252, 1
    %v257 = vrot.slane %v253, 1
    %v262 = vadd.f32 %v233, %v252
    %v263 = vadd.f32 %v234, %v253
    %v264 = vadd.f32 %v235, %v256
    %v265 = vadd.f32 %v236, %v257
    %v270 = vrot.slane %v264, 7
    %v271 = vsel %vm213, %v270, %v262
    %v272 = vrot.slane %v265, 7
    %v273 = vsel %vm213, %v272, %v263
    %276 = vrot.lane.b32.xlu0 %v271, 64
    %v277 = vpop.permute.xlu0 %276
    %278 = vrot.lane.b32.xlu0 %v273, 64
    %v279 = vpop.permute.xlu0 %278
    %vm280 = vcmp.lt.s32.totalorder %v205, 64
    %v281 = vsel %vm280, %v277, %v279
    %v282 = vsel %vm280, %v279, %v277
    %v285 = vrot.slane %v281, 1
    %v286 = vrot.slane %v282, 1
    %v291 = vadd.f32 %v262, %v281
    %v292 = vadd.f32 %v263, %v282
    %v293 = vadd.f32 %v264, %v285
    %v294 = vadd.f32 %v265, %v286
    %v299 = vrot.slane %v293, 7
    %v300 = vsel %vm213, %v299, %v291
    %v301 = vrot.slane %v294, 7
    %v302 = vsel %vm213, %v301, %v292
    %v303 = vrot.slane %v302, 1
    %v304 = vrot.slane %v300, 1
    %v309 = vadd.f32 %v291, %v302
    %v310 = vadd.f32 %v292, %v300
    %v311 = vadd.f32 %v293, %v303
    %v312 = vadd.f32 %v294, %v304
    %v317 = vsel %vm213, %v146, %v128
    %v318 = vsel %vm213, %v155, %v137
    %321 = vrot.lane.b32.xlu0 %v317, 112
    %v322 = vpop.permute.xlu0 %321
    %323 = vrot.lane.b32.xlu0 %v318, 112
    %v324 = vpop.permute.xlu0 %323
    %v325 = vsel %vm222, %v322, %v324
    %v326 = vsel %vm222, %v324, %v322
    %v329 = vrot.slane %v325, 1
    %v330 = vrot.slane %v326, 1
    %v335 = vmax.f32 %v128, %v325
    %v336 = vmax.f32 %v137, %v326
    %v337 = vmax.f32 %v146, %v329
    %v338 = vmax.f32 %v155, %v330
    %v343 = vrot.slane %v337, 7
    %v344 = vsel %vm213, %v343, %v335
    %v345 = vrot.slane %v338, 7
    %v346 = vsel %vm213, %v345, %v336
    %349 = vrot.lane.b32.xlu0 %v344, 96
    %v350 = vpop.permute.xlu0 %349
    %351 = vrot.lane.b32.xlu0 %v346, 96
    %v352 = vpop.permute.xlu0 %351
    %v353 = vsel %vm251, %v350, %v352
    %v354 = vsel %vm251, %v352, %v350
    %v357 = vrot.slane %v353, 1
    %v358 = vrot.slane %v354, 1
    %v363 = vmax.f32 %v335, %v353
    %v364 = vmax.f32 %v336, %v354
    %v365 = vmax.f32 %v337, %v357
    %v366 = vmax.f32 %v338, %v358
    %v371 = vrot.slane %v365, 7
    %v372 = vsel %vm213, %v371, %v363
    %v373 = vrot.slane %v366, 7
    %v374 = vsel %vm213, %v373, %v364
    %377 = vrot.lane.b32.xlu0 %v372, 64
    %v378 = vpop.permute.xlu0 %377
    %379 = vrot.lane.b32.xlu0 %v374, 64
    %v380 = vpop.permute.xlu0 %379
    %v381 = vsel %vm280, %v378, %v380
    %v382 = vsel %vm280, %v380, %v378
    %v385 = vrot.slane %v381, 1
    %v386 = vrot.slane %v382, 1
    %v391 = vmax.f32 %v363, %v381
    %v392 = vmax.f32 %v364, %v382
    %v393 = vmax.f32 %v365, %v385
    %v394 = vmax.f32 %v366, %v386
    %v399 = vrot.slane %v393, 7
    %v400 = vsel %vm213, %v399, %v391
    %v401 = vrot.slane %v394, 7
    %v402 = vsel %vm213, %v401, %v392
    %v403 = vrot.slane %v402, 1
    %v404 = vrot.slane %v400, 1
    %v409 = vmax.f32 %v391, %v402
    %v410 = vmax.f32 %v392, %v400
    %v411 = vmax.f32 %v393, %v403
    %v412 = vmax.f32 %v394, %v404
    %v413 = vmul.f32 %v309, 0.001953125
    %v414 = vmul.f32 %v310, 0.001953125
    %v415 = vmul.f32 %v311, 0.001953125
    %v416 = vmul.f32 %v312, 0.001953125
    %v417 = vadd.f32 %v413, %v409
    %v418 = vadd.f32 %v414, %v410
    %v419 = vadd.f32 %v415, %v411
    %v420 = vadd.f32 %v416, %v412
    %v421 = vmul.f32 %v417, 0.5
    %v422 = vmul.f32 %v418, 0.5
    %v423 = vmul.f32 %v419, 0.5
    %v424 = vmul.f32 %v420, 0.5
    %s425 = sld [smem:[#allocation2 + $0x2]]
    %v426 = vstv %s425
    %v427 = vmul.f32 %v426, %v413
    %v428 = vmul.f32 %v426, %v414
    %v429 = vmul.f32 %v426, %v415
    %v430 = vmul.f32 %v426, %v416
    %v431 = vadd.f32 %v421, %v427
    %v432 = vadd.f32 %v422, %v428
    %v433 = vadd.f32 %v423, %v429
    %v434 = vadd.f32 %v424, %v430
    %s435 = sld [smem:[#allocation2 + $0x3]]
    %v436 = vstv %s435
    %v437 = vmul.f32 %v436, %v409
    %v438 = vmul.f32 %v436, %v410
    %v439 = vmul.f32 %v436, %v411
    %v440 = vmul.f32 %v436, %v412
    %v441 = vadd.f32 %v431, %v437
    %v442 = vadd.f32 %v432, %v438
    %v443 = vadd.f32 %v433, %v439
    %v444 = vadd.f32 %v434, %v440
    %s445 = sld [smem:[#allocation7 + $0x1]]
    %v446 = vstv %s445
    %v447 = vmul.f32 %v446, %v441
    %v448 = vmul.f32 %v446, %v442
    %v449 = vmul.f32 %v446, %v443
    %v450 = vmul.f32 %v446, %v444
    %v455 = vrot.slane %v443, 7
    %v456 = vsel %vm213, %v455, %v441
    %v457 = vrot.slane %v444, 7
    %v458 = vsel %vm213, %v457, %v442
    %461 = vrot.lane.b32.xlu0 %v456, 1
    %v462 = vpop.permute.xlu0 %461
    %463 = vrot.lane.b32.xlu0 %v458, 1
    %v464 = vpop.permute.xlu0 %463
    %vm465 = vcmp.lt.s32.totalorder %v205, 1
    %v466 = vsel %vm465, %v462, %v464
    %v467 = vsel %vm465, %v464, %v462
    %vm468 = vcmp.ge.s32.totalorder %v207, 1
    %vm469 = vcmp.ge.s32.totalorder %v208, 1
    %s470 = sld [smem:[#allocation7]]
    %v471 = vsel %vm468, 1, 0
    %v472 = vsel %vm469, 1, 0
    %vm473 = vcmp.eq.s32.totalorder %v471, 1
    %vm474 = vcmp.eq.s32.totalorder %v472, 1
    %v475 = vsel %vm473, %v467, 0.0
    %v476 = vsel %vm474, %v466, 0.0
    %v477 = vstv %s470
    %v478 = vmul.f32 %v477, %v475
    %v479 = vmul.f32 %v477, %v476
    %v482 = vrot.slane %v478, 1
    %v483 = vrot.slane %v479, 1
    %v488 = vadd.f32 %v447, %v478
    %v489 = vadd.f32 %v448, %v479
    %v490 = vadd.f32 %v449, %v482
    %v491 = vadd.f32 %v450, %v483
    %492 = vrot.lane.b32.xlu0 %v456, 127
    %v493 = vpop.permute.xlu0 %492
    %494 = vrot.lane.b32.xlu0 %v458, 127
    %v495 = vpop.permute.xlu0 %494
    %vm496 = vcmp.lt.s32.totalorder %v205, 127
    %v497 = vsel %vm496, %v493, %v495
    %v498 = vsel %vm496, %v495, %v493
    %vm499 = vcmp.lt.s32.totalorder %v207, 15
    %vm500 = vcmp.lt.s32.totalorder %v208, 15
    %s501 = sld [smem:[#allocation7 + $0x2]]
    %v502 = vsel %vm499, 1, 0
    %v503 = vsel %vm500, 1, 0
    %vm504 = vcmp.eq.s32.totalorder %v502, 1
    %vm505 = vcmp.eq.s32.totalorder %v503, 1
    %v506 = vsel %vm504, %v497, 0.0
    %v507 = vsel %vm505, %v498, 0.0
    %v508 = vstv %s501
    %v509 = vmul.f32 %v508, %v506
    %v510 = vmul.f32 %v508, %v507
    %v513 = vrot.slane %v509, 1
    %v514 = vrot.slane %v510, 1
    %v519 = vadd.f32 %v488, %v509
    %v520 = vadd.f32 %v489, %v510
    %v521 = vadd.f32 %v490, %v513
    %v522 = vadd.f32 %v491, %v514
    %v523 = vxor.u32 %v519, 2147483648
    %v524 = vxor.u32 %v520, 2147483648
    %v525 = vxor.u32 %v521, 2147483648
    %v526 = vxor.u32 %v522, 2147483648
    %v527 = vmul.f32 %v523, 1.442695
    %v528 = vpow.pop %v527
    %v529 = vmul.f32 %v524, 1.442695
    %v530 = vpow.pop %v529
    %v531 = vmul.f32 %v525, 1.442695
    %v532 = vpow.pop %v531
    %v533 = vmul.f32 %v526, 1.442695
    %v534 = vpow.pop %v533
    %v535 = vadd.f32 %v528, 1.0
    %v536 = vadd.f32 %v530, 1.0
    %v537 = vadd.f32 %v532, 1.0
    %v538 = vadd.f32 %v534, 1.0
    %v539 = vrcp.pop %v535
    %v540 = vmul.f32 1.0, %v539
    %v541 = vrcp.pop %v536
    %v542 = vmul.f32 1.0, %v541
    %v543 = vrcp.pop %v537
    %v544 = vmul.f32 1.0, %v543
    %v545 = vrcp.pop %v538
    %v546 = vmul.f32 1.0, %v545
    %547 = vrot.lane.b32.xlu0 %v214, 127
    %v548 = vpop.permute.xlu0 %547
    %549 = vrot.lane.b32.xlu0 %v215, 127
    %v550 = vpop.permute.xlu0 %549
    %v551 = vsel %vm496, %v548, %v550
    %v552 = vsel %vm496, %v550, %v548
    %v555 = vrot.slane %v551, 1
    %v556 = vrot.slane %v552, 1
    %v561 = vadd.f32 %v92, %v551
    %v562 = vadd.f32 %v101, %v552
    %v563 = vadd.f32 %v110, %v555
    %v564 = vadd.f32 %v119, %v556
    %v569 = vrot.slane %v563, 7
    %v570 = vsel %vm213, %v569, %v561
    %v571 = vrot.slane %v564, 7
    %v572 = vsel %vm213, %v571, %v562
    %575 = vrot.lane.b32.xlu0 %v570, 126
    %v576 = vpop.permute.xlu0 %575
    %577 = vrot.lane.b32.xlu0 %v572, 126
    %v578 = vpop.permute.xlu0 %577
    %vm579 = vcmp.lt.s32.totalorder %v205, 126
    %v580 = vsel %vm579, %v576, %v578
    %v581 = vsel %vm579, %v578, %v576
    %v584 = vrot.slane %v580, 1
    %v585 = vrot.slane %v581, 1
    %v590 = vadd.f32 %v561, %v580
    %v591 = vadd.f32 %v562, %v581
    %v592 = vadd.f32 %v563, %v584
    %v593 = vadd.f32 %v564, %v585
    %v598 = vrot.slane %v592, 7
    %v599 = vsel %vm213, %v598, %v590
    %v600 = vrot.slane %v593, 7
    %v601 = vsel %vm213, %v600, %v591
    %604 = vrot.lane.b32.xlu0 %v599, 124
    %v605 = vpop.permute.xlu0 %604
    %606 = vrot.lane.b32.xlu0 %v601, 124
    %v607 = vpop.permute.xlu0 %606
    %vm608 = vcmp.lt.s32.totalorder %v205, 124
    %v609 = vsel %vm608, %v605, %v607
    %v610 = vsel %vm608, %v607, %v605
    %v613 = vrot.slane %v609, 1
    %v614 = vrot.slane %v610, 1
    %v619 = vadd.f32 %v590, %v609
    %v620 = vadd.f32 %v591, %v610
    %v621 = vadd.f32 %v592, %v613
    %v622 = vadd.f32 %v593, %v614
    %v627 = vrot.slane %v621, 7
    %v628 = vsel %vm213, %v627, %v619
    %v629 = vrot.slane %v622, 7
    %v630 = vsel %vm213, %v629, %v620
    %633 = vrot.lane.b32.xlu0 %v628, 120
    %v634 = vpop.permute.xlu0 %633
    %635 = vrot.lane.b32.xlu0 %v630, 120
    %v636 = vpop.permute.xlu0 %635
    %vm637 = vcmp.lt.s32.totalorder %v205, 120
    %v638 = vsel %vm637, %v634, %v636
    %v639 = vsel %vm637, %v636, %v634
    %v642 = vrot.slane %v638, 1
    %v643 = vrot.slane %v639, 1
    %v648 = vadd.f32 %v619, %v638
    %v649 = vadd.f32 %v620, %v639
    %v650 = vadd.f32 %v621, %v642
    %v651 = vadd.f32 %v622, %v643
    %652 = vrot.lane.b32.xlu0 %v317, 127
    %v653 = vpop.permute.xlu0 %652
    %654 = vrot.lane.b32.xlu0 %v318, 127
    %v655 = vpop.permute.xlu0 %654
    %v656 = vsel %vm496, %v653, %v655
    %v657 = vsel %vm496, %v655, %v653
    %v660 = vrot.slane %v656, 1
    %v661 = vrot.slane %v657, 1
    %v666 = vmax.f32 %v128, %v656
    %v667 = vmax.f32 %v137, %v657
    %v668 = vmax.f32 %v146, %v660
    %v669 = vmax.f32 %v155, %v661
    %v674 = vrot.slane %v668, 7
    %v675 = vsel %vm213, %v674, %v666
    %v676 = vrot.slane %v669, 7
    %v677 = vsel %vm213, %v676, %v667
    %680 = vrot.lane.b32.xlu0 %v675, 126
    %v681 = vpop.permute.xlu0 %680
    %682 = vrot.lane.b32.xlu0 %v677, 126
    %v683 = vpop.permute.xlu0 %682
    %v684 = vsel %vm579, %v681, %v683
    %v685 = vsel %vm579, %v683, %v681
    %v688 = vrot.slane %v684, 1
    %v689 = vrot.slane %v685, 1
    %v694 = vmax.f32 %v666, %v684
    %v695 = vmax.f32 %v667, %v685
    %v696 = vmax.f32 %v668, %v688
    %v697 = vmax.f32 %v669, %v689
    %v702 = vrot.slane %v696, 7
    %v703 = vsel %vm213, %v702, %v694
    %v704 = vrot.slane %v697, 7
    %v705 = vsel %vm213, %v704, %v695
    %708 = vrot.lane.b32.xlu0 %v703, 124
    %v709 = vpop.permute.xlu0 %708
    %710 = vrot.lane.b32.xlu0 %v705, 124
    %v711 = vpop.permute.xlu0 %710
    %v712 = vsel %vm608, %v709, %v711
    %v713 = vsel %vm608, %v711, %v709
    %v716 = vrot.slane %v712, 1
    %v717 = vrot.slane %v713, 1
    %v722 = vmax.f32 %v694, %v712
    %v723 = vmax.f32 %v695, %v713
    %v724 = vmax.f32 %v696, %v716
    %v725 = vmax.f32 %v697, %v717
    %v730 = vrot.slane %v724, 7
    %v731 = vsel %vm213, %v730, %v722
    %v732 = vrot.slane %v725, 7
    %v733 = vsel %vm213, %v732, %v723
    %736 = vrot.lane.b32.xlu0 %v731, 120
    %v737 = vpop.permute.xlu0 %736
    %738 = vrot.lane.b32.xlu0 %v733, 120
    %v739 = vpop.permute.xlu0 %738
    %v740 = vsel %vm637, %v737, %v739
    %v741 = vsel %vm637, %v739, %v737
    %v744 = vrot.slane %v740, 1
    %v745 = vrot.slane %v741, 1
    %v750 = vmax.f32 %v722, %v740
    %v751 = vmax.f32 %v723, %v741
    %v752 = vmax.f32 %v724, %v744
    %v753 = vmax.f32 %v725, %v745
    %v754 = vmul.f32 %v648, 0.001953125
    %v755 = vmul.f32 %v649, 0.001953125
    %v756 = vmul.f32 %v650, 0.001953125
    %v757 = vmul.f32 %v651, 0.001953125
    %v758 = vadd.f32 %v754, %v750
    %v759 = vadd.f32 %v755, %v751
    %v760 = vadd.f32 %v756, %v752
    %v761 = vadd.f32 %v757, %v753
    %v762 = vmul.f32 %v758, 0.5
    %v763 = vmul.f32 %v759, 0.5
    %v764 = vmul.f32 %v760, 0.5
    %v765 = vmul.f32 %v761, 0.5
    %s766 = sld [smem:[#allocation2]]
    %v767 = vstv %s766
    %v768 = vmul.f32 %v767, %v754
    %v769 = vmul.f32 %v767, %v755
    %v770 = vmul.f32 %v767, %v756
    %v771 = vmul.f32 %v767, %v757
    %v772 = vadd.f32 %v762, %v768
    %v773 = vadd.f32 %v763, %v769
    %v774 = vadd.f32 %v764, %v770
    %v775 = vadd.f32 %v765, %v771
    %s776 = sld [smem:[#allocation2 + $0x1]]
    %v777 = vstv %s776
    %v778 = vmul.f32 %v777, %v750
    %v779 = vmul.f32 %v777, %v751
    %v780 = vmul.f32 %v777, %v752
    %v781 = vmul.f32 %v777, %v753
    %v782 = vadd.f32 %v772, %v778
    %v783 = vadd.f32 %v773, %v779
    %v784 = vadd.f32 %v774, %v780
    %v785 = vadd.f32 %v775, %v781
    %s786 = sld [smem:[#allocation6 + $0x1]]
    %v787 = vstv %s786
    %v788 = vmul.f32 %v787, %v782
    %v789 = vmul.f32 %v787, %v783
    %v790 = vmul.f32 %v787, %v784
    %v791 = vmul.f32 %v787, %v785
    %v796 = vrot.slane %v784, 7
    %v797 = vsel %vm213, %v796, %v782
    %v798 = vrot.slane %v785, 7
    %v799 = vsel %vm213, %v798, %v783
    %802 = vrot.lane.b32.xlu0 %v797, 16
    %v803 = vpop.permute.xlu0 %802
    %804 = vrot.lane.b32.xlu0 %v799, 16
    %v805 = vpop.permute.xlu0 %804
    %vm806 = vcmp.lt.s32.totalorder %v205, 16
    %v807 = vsel %vm806, %v803, %v805
    %v808 = vsel %vm806, %v805, %v803
    %vm809 = vcmp.ge.s32.totalorder %v205, 16
    %vm810 = vcmp.ge.s32.totalorder %v206, 16
    %s811 = sld [smem:[#allocation6]]
    %v812 = vsel %vm809, 1, 0
    %v813 = vsel %vm810, 1, 0
    %vm814 = vcmp.eq.s32.totalorder %v812, 1
    %vm815 = vcmp.eq.s32.totalorder %v813, 1
    %v816 = vsel %vm814, %v808, 0.0
    %v817 = vsel %vm815, %v807, 0.0
    %v818 = vstv %s811
    %v819 = vmul.f32 %v818, %v816
    %v820 = vmul.f32 %v818, %v817
    %v823 = vrot.slane %v819, 1
    %v824 = vrot.slane %v820, 1
    %v829 = vadd.f32 %v788, %v819
    %v830 = vadd.f32 %v789, %v820
    %v831 = vadd.f32 %v790, %v823
    %v832 = vadd.f32 %v791, %v824
    %833 = vrot.lane.b32.xlu0 %v797, 112
    %v834 = vpop.permute.xlu0 %833
    %835 = vrot.lane.b32.xlu0 %v799, 112
    %v836 = vpop.permute.xlu0 %835
    %v837 = vsel %vm222, %v834, %v836
    %v838 = vsel %vm222, %v836, %v834
    %vm839 = vcmp.lt.s32.totalorder %v205, 240
    %vm840 = vcmp.lt.s32.totalorder %v206, 240
    %s841 = sld [smem:[#allocation6 + $0x2]]
    %v842 = vsel %vm839, 1, 0
    %v843 = vsel %vm840, 1, 0
    %vm844 = vcmp.eq.s32.totalorder %v842, 1
    %vm845 = vcmp.eq.s32.totalorder %v843, 1
    %v846 = vsel %vm844, %v837, 0.0
    %v847 = vsel %vm845, %v838, 0.0
    %v848 = vstv %s841
    %v849 = vmul.f32 %v848, %v846
    %v850 = vmul.f32 %v848, %v847
    %v853 = vrot.slane %v849, 1
    %v854 = vrot.slane %v850, 1
    %v859 = vadd.f32 %v829, %v849
    %v860 = vadd.f32 %v830, %v850
    %v861 = vadd.f32 %v831, %v853
    %v862 = vadd.f32 %v832, %v854
    %v863 = vxor.u32 %v859, 2147483648
    %v864 = vxor.u32 %v860, 2147483648
    %v865 = vxor.u32 %v861, 2147483648
    %v866 = vxor.u32 %v862, 2147483648
    %v867 = vmul.f32 %v863, 1.442695
    %v868 = vpow.pop %v867
    %v869 = vmul.f32 %v864, 1.442695
    %v870 = vpow.pop %v869
    %v871 = vmul.f32 %v865, 1.442695
    %v872 = vpow.pop %v871
    %v873 = vmul.f32 %v866, 1.442695
    %v874 = vpow.pop %v873
    %v875 = vadd.f32 %v868, 1.0
    %v876 = vadd.f32 %v870, 1.0
    %v877 = vadd.f32 %v872, 1.0
    %v878 = vadd.f32 %v874, 1.0
    %v879 = vrcp.pop %v875
    %v880 = vmul.f32 1.0, %v879
    %v881 = vrcp.pop %v876
    %v882 = vmul.f32 1.0, %v881
    %v883 = vrcp.pop %v877
    %v884 = vmul.f32 1.0, %v883
    %v885 = vrcp.pop %v878
    %v886 = vmul.f32 1.0, %v885
    %v891 = vrot.slane %v884, 7
    %v892 = vsel %vm213, %v891, %v880
    %v893 = vrot.slane %v886, 7
    %v894 = vsel %vm213, %v893, %v882
    %897 = vrot.lane.b32.xlu0 %v892, 1
    %v898 = vpop.permute.xlu0 %897
    %899 = vrot.lane.b32.xlu0 %v894, 1
    %v900 = vpop.permute.xlu0 %899
    %v901 = vsel %vm465, %v898, %v900
    %v902 = vsel %vm465, %v900, %v898
    %v903 = vsel %vm473, %v902, %v892
    %v904 = vsel %vm474, %v901, %v894
    %905 = vrot.lane.b32.xlu0 %v903, 2
    %v906 = vpop.permute.xlu0 %905
    %907 = vrot.lane.b32.xlu0 %v904, 2
    %v908 = vpop.permute.xlu0 %907
    %vm909 = vcmp.lt.s32.totalorder %v205, 2
    %v910 = vsel %vm909, %v906, %v908
    %v911 = vsel %vm909, %v908, %v906
    %vm912 = vcmp.ge.s32.totalorder %v207, 2
    %vm913 = vcmp.ge.s32.totalorder %v208, 2
    %v914 = vsel %vm912, 1, 0
    %v915 = vsel %vm913, 1, 0
    %vm916 = vcmp.eq.s32.totalorder %v914, 1
    %vm917 = vcmp.eq.s32.totalorder %v915, 1
    %v918 = vsel %vm916, %v911, %v903
    %v919 = vsel %vm917, %v910, %v904
    %920 = vrot.lane.b32.xlu0 %v918, 4
    %v921 = vpop.permute.xlu0 %920
    %922 = vrot.lane.b32.xlu0 %v919, 4
    %v923 = vpop.permute.xlu0 %922
    %vm924 = vcmp.lt.s32.totalorder %v205, 4
    %v925 = vsel %vm924, %v921, %v923
    %v926 = vsel %vm924, %v923, %v921
    %vm927 = vcmp.ge.s32.totalorder %v207, 4
    %vm928 = vcmp.ge.s32.totalorder %v208, 4
    %v929 = vsel %vm927, 1, 0
    %v930 = vsel %vm928, 1, 0
    %vm931 = vcmp.eq.s32.totalorder %v929, 1
    %vm932 = vcmp.eq.s32.totalorder %v930, 1
    %v933 = vsel %vm931, %v926, %v918
    %v934 = vsel %vm932, %v925, %v919
    %935 = vrot.lane.b32.xlu0 %v933, 8
    %v936 = vpop.permute.xlu0 %935
    %937 = vrot.lane.b32.xlu0 %v934, 8
    %v938 = vpop.permute.xlu0 %937
    %vm939 = vcmp.lt.s32.totalorder %v205, 8
    %v940 = vsel %vm939, %v936, %v938
    %v941 = vsel %vm939, %v938, %v936
    %vm942 = vcmp.ge.s32.totalorder %v207, 8
    %vm943 = vcmp.ge.s32.totalorder %v208, 8
    %v944 = vsel %vm942, 1, 0
    %v945 = vsel %vm943, 1, 0
    %vm946 = vcmp.eq.s32.totalorder %v944, 1
    %vm947 = vcmp.eq.s32.totalorder %v945, 1
    %v948 = vsel %vm946, %v941, %v933
    %v949 = vsel %vm947, %v940, %v934
    %v954 = vrot.slane %v544, 7
    %v955 = vsel %vm213, %v954, %v540
    %v956 = vrot.slane %v546, 7
    %v957 = vsel %vm213, %v956, %v542
    %v960 = vadd.f32 %v948, %v955
    %v961 = vadd.f32 %v949, %v957
    %v962 = vlaneseq
    %v963 = vshrl.u32 %v962, 7
    %v964 = vadd.s32 %v963, 8
    %v965 = vadd.s32 %v963, 16
    %v966 = vadd.s32 %v963, 24
    %vm967 = vcmp.ge.s32.totalorder %v963, 1
    %vm968 = vcmp.ge.s32.totalorder %v964, 1
    %vm969 = vcmp.ge.s32.totalorder %v965, 1
    %vm970 = vcmp.ge.s32.totalorder %v966, 1
    %vm971 = vcmp.lt.s32.totalorder %v963, 31
    %vm972 = vcmp.lt.s32.totalorder %v964, 31
    %vm973 = vcmp.lt.s32.totalorder %v965, 31
    %vm974 = vcmp.lt.s32.totalorder %v966, 31
    %v975 = vmul.f32 %v158, 0.00390625
    %v976 = vmul.f32 %v161, 0.00390625
    %v977 = vmul.f32 %v164, 0.00390625
    %v978 = vmul.f32 %v167, 0.00390625
    %v979 = vadd.f32 %v975, %v182
    %v980 = vadd.f32 %v976, %v185
    %v981 = vadd.f32 %v977, %v188
    %v982 = vadd.f32 %v978, %v191
    %v983 = vmul.f32 %v979, 0.5
    %v984 = vmul.f32 %v980, 0.5
    %v985 = vmul.f32 %v981, 0.5
    %v986 = vmul.f32 %v982, 0.5
    %s987 = sld [smem:[#allocation2 + $0x4]]
    %v988 = vstv %s987
    %v989 = vmul.f32 %v988, %v975
    %v990 = vmul.f32 %v988, %v976
    %v991 = vmul.f32 %v988, %v977
    %v992 = vmul.f32 %v988, %v978
    %v993 = vadd.f32 %v983, %v989
    %v994 = vadd.f32 %v984, %v990
    %v995 = vadd.f32 %v985, %v991
    %v996 = vadd.f32 %v986, %v992
    %s997 = sld [smem:[#allocation2 + $0x5]]
    %v998 = vstv %s997
    %v999 = vmul.f32 %v998, %v182
    %v1000 = vmul.f32 %v998, %v185
    %v1001 = vmul.f32 %v998, %v188
    %v1002 = vmul.f32 %v998, %v191
    %v1003 = vadd.f32 %v993, %v999
    %v1004 = vadd.f32 %v994, %v1000
    %v1005 = vadd.f32 %v995, %v1001
    %v1006 = vadd.f32 %v996, %v1002
    %s1007 = sld [smem:[#allocation4 + $0x1]]
    %v1008 = vstv %s1007
    %v1009 = vmul.f32 %v1008, %v1003
    %v1010 = vmul.f32 %v1008, %v1004
    %v1011 = vmul.f32 %v1008, %v1005
    %v1012 = vmul.f32 %v1008, %v1006
    %v1013 = vrot.slane %v1003, 7
    %v1014 = vrot.slane %v1004, 7
    %v1015 = vrot.slane %v1005, 7
    %v1016 = vrot.slane %v1006, 7
    %vm1017 = vcmp.lt.s32.totalorder %v963, 1
    %v1018 = vsel %vm1017, %v1015, %v1016
    %v1019 = vsel %vm1017, %v1014, %v1015
    %v1020 = vsel %vm1017, %v1013, %v1014
    %v1021 = vsel %vm1017, %v1016, %v1013
    %s1022 = sld [smem:[#allocation4]]
    %v1023 = vsel %vm967, %v1021, 0.0
    %v1024 = vsel %vm968, %v1020, 0.0
    %v1025 = vsel %vm969, %v1019, 0.0
    %v1026 = vsel %vm970, %v1018, 0.0
    %v1027 = vstv %s1022
    %v1028 = vmul.f32 %v1027, %v1023
    %v1029 = vmul.f32 %v1027, %v1024
    %v1030 = vmul.f32 %v1027, %v1025
    %v1031 = vmul.f32 %v1027, %v1026
    %v1032 = vadd.f32 %v1009, %v1028
    %v1033 = vadd.f32 %v1010, %v1029
    %v1034 = vadd.f32 %v1011, %v1030
    %v1035 = vadd.f32 %v1012, %v1031
    %v1036 = vrot.slane %v1003, 1
    %v1037 = vrot.slane %v1004, 1
    %v1038 = vrot.slane %v1005, 1
    %v1039 = vrot.slane %v1006, 1
    %vm1040 = vcmp.lt.s32.totalorder %v963, 7
    %v1041 = vsel %vm1040, %v1038, %v1039
    %v1042 = vsel %vm1040, %v1037, %v1038
    %v1043 = vsel %vm1040, %v1036, %v1037
    %v1044 = vsel %vm1040, %v1039, %v1036
    %s1045 = sld [smem:[#allocation4 + $0x2]]
    %v1046 = vsel %vm971, %v1043, 0.0
    %v1047 = vsel %vm972, %v1042, 0.0
    %v1048 = vsel %vm973, %v1041, 0.0
    %v1049 = vsel %vm974, %v1044, 0.0
    %v1050 = vstv %s1045
    %v1051 = vmul.f32 %v1050, %v1046
    %v1052 = vmul.f32 %v1050, %v1047
    %v1053 = vmul.f32 %v1050, %v1048
    %v1054 = vmul.f32 %v1050, %v1049
    %v1055 = vadd.f32 %v1032, %v1051
    %v1056 = vadd.f32 %v1033, %v1052
    %v1057 = vadd.f32 %v1034, %v1053
    %v1058 = vadd.f32 %v1035, %v1054
    %v1059 = vxor.u32 %v1055, 2147483648
    %v1060 = vxor.u32 %v1056, 2147483648
    %v1061 = vxor.u32 %v1057, 2147483648
    %v1062 = vxor.u32 %v1058, 2147483648
    %v1063 = vmul.f32 %v1059, 1.442695
    %v1064 = vpow.pop %v1063
    %v1065 = vmul.f32 %v1060, 1.442695
    %v1066 = vpow.pop %v1065
    %v1067 = vmul.f32 %v1061, 1.442695
    %v1068 = vpow.pop %v1067
    %v1069 = vmul.f32 %v1062, 1.442695
    %v1070 = vpow.pop %v1069
    %v1071 = vadd.f32 %v1064, 1.0
    %v1072 = vadd.f32 %v1066, 1.0
    %v1073 = vadd.f32 %v1068, 1.0
    %v1074 = vadd.f32 %v1070, 1.0
    %v1075 = vrcp.pop %v1071
    %v1076 = vmul.f32 1.0, %v1075
    %v1077 = vrcp.pop %v1072
    %v1078 = vmul.f32 1.0, %v1077
    %v1079 = vrcp.pop %v1073
    %v1080 = vmul.f32 1.0, %v1079
    %v1081 = vrcp.pop %v1074
    %v1082 = vmul.f32 1.0, %v1081
    %1084 = vset.pattern.permute.xlu0 0
    %1085 = vperm.xlu0 %1084, %v1076
    %v1086 = vpop.permute.xlu0 %1085
    %1089 = vset.pattern.permute.xlu0 0
    %1090 = vperm.xlu0 %1089, %v1078
    %v1091 = vpop.permute.xlu0 %1090
    %1094 = vset.pattern.permute.xlu0 0
    %1095 = vperm.xlu0 %1094, %v1080
    %v1096 = vpop.permute.xlu0 %1095
    %1099 = vset.pattern.permute.xlu0 0
    %1100 = vperm.xlu0 %1099, %v1082
    %v1101 = vpop.permute.xlu0 %1100
    %v1103 = vlaneseq
    %v1104 = vshrl.u32 %v1103, 7
    %v1105 = vsub.s32 0, %v1104
    %v1106 = vrot.slane %v960, %v1105
    %v1107 = vlaneseq
    %v1108 = vshrl.u32 %v1107, 7
    %v1109 = vsub.s32 0, %v1108
    %v1110 = vrot.slane %v961, %v1109
    %v1111 = vadd.f32 %v1086, %v1106
    %v1112 = vadd.f32 %v1086, %v1110
    %v1113 = vadd.f32 %v1091, %v1106
    %v1114 = vadd.f32 %v1091, %v1110
    %v1115 = vadd.f32 %v1096, %v1106
    %v1116 = vadd.f32 %v1096, %v1110
    %v1117 = vadd.f32 %v1101, %v1106
    %v1118 = vadd.f32 %v1101, %v1110
    %v1119 = vmul.f32 %v1111, 0.33333334
    %v1120 = vmul.f32 %v1112, 0.33333334
    %v1121 = vmul.f32 %v1113, 0.33333334
    %v1122 = vmul.f32 %v1114, 0.33333334
    %v1123 = vmul.f32 %v1115, 0.33333334
    %v1124 = vmul.f32 %v1116, 0.33333334
    %v1125 = vmul.f32 %v1117, 0.33333334
    %v1126 = vmul.f32 %v1118, 0.33333334
    %v1127 = vld [vmem:[%s0] sm:$0xff]
    %v1128 = vld [vmem:[%s0 + $0x8] sm:$0xff]
    %v1129 = vld [vmem:[%s0 + $0x10] sm:$0xff]
    %v1130 = vld [vmem:[%s0 + $0x18] sm:$0xff]
    %v1131 = vld [vmem:[%s0 + $0x20] sm:$0xff]
    %v1132 = vld [vmem:[%s0 + $0x28] sm:$0xff]
    %v1133 = vld [vmem:[%s0 + $0x30] sm:$0xff]
    %v1134 = vld [vmem:[%s0 + $0x38] sm:$0xff]
    %v1135 = vmul.f32 %v1127, %v1119
    %v1136 = vmul.f32 %v1128, %v1120
    %v1137 = vmul.f32 %v1129, %v1121
    %v1138 = vmul.f32 %v1130, %v1122
    %v1139 = vmul.f32 %v1131, %v1123
    %v1140 = vmul.f32 %v1132, %v1124
    %v1141 = vmul.f32 %v1133, %v1125
    %v1142 = vmul.f32 %v1134, %v1126
    %1143 = vst [vmem:[%s5] sm:$0xff] %v1135
    %1144 = vst [vmem:[%s5 + $0x8] sm:$0xff] %v1136
    %1145 = vst [vmem:[%s5 + $0x10] sm:$0xff] %v1137
    %1146 = vst [vmem:[%s5 + $0x18] sm:$0xff] %v1138
    %1147 = vst [vmem:[%s5 + $0x20] sm:$0xff] %v1139
    %1148 = vst [vmem:[%s5 + $0x28] sm:$0xff] %v1140
    %1149 = vst [vmem:[%s5 + $0x30] sm:$0xff] %v1141
    %1150 = vst [vmem:[%s5 + $0x38] sm:$0xff] %v1142
    %v1151 = vmul.f32 %v170, 0.00390625
    %v1152 = vmul.f32 %v173, 0.00390625
    %v1153 = vmul.f32 %v176, 0.00390625
    %v1154 = vmul.f32 %v179, 0.00390625
    %v1155 = vadd.f32 %v1151, %v194
    %v1156 = vadd.f32 %v1152, %v197
    %v1157 = vadd.f32 %v1153, %v200
    %v1158 = vadd.f32 %v1154, %v203
    %v1159 = vmul.f32 %v1155, 0.5
    %v1160 = vmul.f32 %v1156, 0.5
    %v1161 = vmul.f32 %v1157, 0.5
    %v1162 = vmul.f32 %v1158, 0.5
    %s1163 = sld [smem:[#allocation2 + $0x4]]
    %v1164 = vstv %s1163
    %v1165 = vmul.f32 %v1164, %v1151
    %v1166 = vmul.f32 %v1164, %v1152
    %v1167 = vmul.f32 %v1164, %v1153
    %v1168 = vmul.f32 %v1164, %v1154
    %v1169 = vadd.f32 %v1159, %v1165
    %v1170 = vadd.f32 %v1160, %v1166
    %v1171 = vadd.f32 %v1161, %v1167
    %v1172 = vadd.f32 %v1162, %v1168
    %s1173 = sld [smem:[#allocation2 + $0x5]]
    %v1174 = vstv %s1173
    %v1175 = vmul.f32 %v1174, %v194
    %v1176 = vmul.f32 %v1174, %v197
    %v1177 = vmul.f32 %v1174, %v200
    %v1178 = vmul.f32 %v1174, %v203
    %v1179 = vadd.f32 %v1169, %v1175
    %v1180 = vadd.f32 %v1170, %v1176
    %v1181 = vadd.f32 %v1171, %v1177
    %v1182 = vadd.f32 %v1172, %v1178
    %s1183 = sld [smem:[#allocation4 + $0x1]]
    %v1184 = vstv %s1183
    %v1185 = vmul.f32 %v1184, %v1179
    %v1186 = vmul.f32 %v1184, %v1180
    %v1187 = vmul.f32 %v1184, %v1181
    %v1188 = vmul.f32 %v1184, %v1182
    %v1189 = vrot.slane %v1179, 7
    %v1190 = vrot.slane %v1180, 7
    %v1191 = vrot.slane %v1181, 7
    %v1192 = vrot.slane %v1182, 7
    %v1193 = vsel %vm1017, %v1191, %v1192
    %v1194 = vsel %vm1017, %v1190, %v1191
    %v1195 = vsel %vm1017, %v1189, %v1190
    %v1196 = vsel %vm1017, %v1192, %v1189
    %s1197 = sld [smem:[#allocation4]]
    %v1198 = vsel %vm967, %v1196, 0.0
    %v1199 = vsel %vm968, %v1195, 0.0
    %v1200 = vsel %vm969, %v1194, 0.0
    %v1201 = vsel %vm970, %v1193, 0.0
    %v1202 = vstv %s1197
    %v1203 = vmul.f32 %v1202, %v1198
    %v1204 = vmul.f32 %v1202, %v1199
    %v1205 = vmul.f32 %v1202, %v1200
    %v1206 = vmul.f32 %v1202, %v1201
    %v1207 = vadd.f32 %v1185, %v1203
    %v1208 = vadd.f32 %v1186, %v1204
    %v1209 = vadd.f32 %v1187, %v1205
    %v1210 = vadd.f32 %v1188, %v1206
    %v1211 = vrot.slane %v1179, 1
    %v1212 = vrot.slane %v1180, 1
    %v1213 = vrot.slane %v1181, 1
    %v1214 = vrot.slane %v1182, 1
    %v1215 = vsel %vm1040, %v1213, %v1214
    %v1216 = vsel %vm1040, %v1212, %v1213
    %v1217 = vsel %vm1040, %v1211, %v1212
    %v1218 = vsel %vm1040, %v1214, %v1211
    %s1219 = sld [smem:[#allocation4 + $0x2]]
    %v1220 = vsel %vm971, %v1217, 0.0
    %v1221 = vsel %vm972, %v1216, 0.0
    %v1222 = vsel %vm973, %v1215, 0.0
    %v1223 = vsel %vm974, %v1218, 0.0
    %v1224 = vstv %s1219
    %v1225 = vmul.f32 %v1224, %v1220
    %v1226 = vmul.f32 %v1224, %v1221
    %v1227 = vmul.f32 %v1224, %v1222
    %v1228 = vmul.f32 %v1224, %v1223
    %v1229 = vadd.f32 %v1207, %v1225
    %v1230 = vadd.f32 %v1208, %v1226
    %v1231 = vadd.f32 %v1209, %v1227
    %v1232 = vadd.f32 %v1210, %v1228
    %v1233 = vxor.u32 %v1229, 2147483648
    %v1234 = vxor.u32 %v1230, 2147483648
    %v1235 = vxor.u32 %v1231, 2147483648
    %v1236 = vxor.u32 %v1232, 2147483648
    %v1237 = vmul.f32 %v1233, 1.442695
    %v1238 = vpow.pop %v1237
    %v1239 = vmul.f32 %v1234, 1.442695
    %v1240 = vpow.pop %v1239
    %v1241 = vmul.f32 %v1235, 1.442695
    %v1242 = vpow.pop %v1241
    %v1243 = vmul.f32 %v1236, 1.442695
    %v1244 = vpow.pop %v1243
    %v1245 = vadd.f32 %v1238, 1.0
    %v1246 = vadd.f32 %v1240, 1.0
    %v1247 = vadd.f32 %v1242, 1.0
    %v1248 = vadd.f32 %v1244, 1.0
    %v1249 = vrcp.pop %v1245
    %v1250 = vmul.f32 1.0, %v1249
    %v1251 = vrcp.pop %v1246
    %v1252 = vmul.f32 1.0, %v1251
    %v1253 = vrcp.pop %v1247
    %v1254 = vmul.f32 1.0, %v1253
    %v1255 = vrcp.pop %v1248
    %v1256 = vmul.f32 1.0, %v1255
    %1258 = vset.pattern.permute.xlu0 0
    %1259 = vperm.xlu0 %1258, %v1250
    %v1260 = vpop.permute.xlu0 %1259
    %1263 = vset.pattern.permute.xlu0 0
    %1264 = vperm.xlu0 %1263, %v1252
    %v1265 = vpop.permute.xlu0 %1264
    %1268 = vset.pattern.permute.xlu0 0
    %1269 = vperm.xlu0 %1268, %v1254
    %v1270 = vpop.permute.xlu0 %1269
    %1273 = vset.pattern.permute.xlu0 0
    %1274 = vperm.xlu0 %1273, %v1256
    %v1275 = vpop.permute.xlu0 %1274
    %v1277 = vlaneseq
    %v1278 = vshrl.u32 %v1277, 7
    %v1279 = vsub.s32 1, %v1278
    %v1280 = vrot.slane %v960, %v1279
    %v1281 = vlaneseq
    %v1282 = vshrl.u32 %v1281, 7
    %v1283 = vsub.s32 1, %v1282
    %v1284 = vrot.slane %v961, %v1283
    %v1285 = vadd.f32 %v1260, %v1280
    %v1286 = vadd.f32 %v1260, %v1284
    %v1287 = vadd.f32 %v1265, %v1280
    %v1288 = vadd.f32 %v1265, %v1284
    %v1289 = vadd.f32 %v1270, %v1280
    %v1290 = vadd.f32 %v1270, %v1284
    %v1291 = vadd.f32 %v1275, %v1280
    %v1292 = vadd.f32 %v1275, %v1284
    %v1293 = vmul.f32 %v1285, 0.33333334
    %v1294 = vmul.f32 %v1286, 0.33333334
    %v1295 = vmul.f32 %v1287, 0.33333334
    %v1296 = vmul.f32 %v1288, 0.33333334
    %v1297 = vmul.f32 %v1289, 0.33333334
    %v1298 = vmul.f32 %v1290, 0.33333334
    %v1299 = vmul.f32 %v1291, 0.33333334
    %v1300 = vmul.f32 %v1292, 0.33333334
    %s1301 = scalar_lea.vmem %s0, 64
    %v1302 = vld [vmem:[%s1301] sm:$0xff]
    %v1303 = vld [vmem:[%s1301 + $0x8] sm:$0xff]
    %v1304 = vld [vmem:[%s1301 + $0x10] sm:$0xff]
    %v1305 = vld [vmem:[%s1301 + $0x18] sm:$0xff]
    %v1306 = vld [vmem:[%s1301 + $0x20] sm:$0xff]
    %v1307 = vld [vmem:[%s1301 + $0x28] sm:$0xff]
    %v1308 = vld [vmem:[%s1301 + $0x30] sm:$0xff]
    %v1309 = vld [vmem:[%s1301 + $0x38] sm:$0xff]
    %v1310 = vmul.f32 %v1302, %v1293
    %v1311 = vmul.f32 %v1303, %v1294
    %v1312 = vmul.f32 %v1304, %v1295
    %v1313 = vmul.f32 %v1305, %v1296
    %v1314 = vmul.f32 %v1306, %v1297
    %v1315 = vmul.f32 %v1307, %v1298
    %v1316 = vmul.f32 %v1308, %v1299
    %v1317 = vmul.f32 %v1309, %v1300
    %s1318 = scalar_lea.vmem %s5, 64
    %1319 = vst [vmem:[%s1318] sm:$0xff] %v1310
    %1320 = vst [vmem:[%s1318 + $0x8] sm:$0xff] %v1311
    %1321 = vst [vmem:[%s1318 + $0x10] sm:$0xff] %v1312
    %1322 = vst [vmem:[%s1318 + $0x18] sm:$0xff] %v1313
    %1323 = vst [vmem:[%s1318 + $0x20] sm:$0xff] %v1314
    %1324 = vst [vmem:[%s1318 + $0x28] sm:$0xff] %v1315
    %1325 = vst [vmem:[%s1318 + $0x30] sm:$0xff] %v1316
    %1326 = vst [vmem:[%s1318 + $0x38] sm:$0xff] %v1317
    // Predicated region
    $region38: #{mdlayer_forward.1} parent=1 // pred_check
      _
    $region39: #{mdlayer_forward.1} parent=1 // pred_check_branch
      %1328 = sbr.rel (0) target = $region41
    $region40: #{mdlayer_forward.1} parent=1 // pred_region
      _
    $region41: #{mdlayer_forward.1} parent=1 // pred_fallthru
      _
    // Predicated region
    $region42: #{mdlayer_forward.1} parent=1 // pred_check
      _
    $region43: #{mdlayer_forward.1} parent=1 // pred_check_branch
      %1330 = sbr.rel (0) target = $region45
    $region44: #{mdlayer_forward.1} parent=1 // pred_region
      _
    $region45: #{mdlayer_forward.1} parent=1 // pred_fallthru
      _
    %1331 = vsyncpa [#allocation3], 1
    %1332 = vsyncpa [#allocation5], 1
    %1333 = vsyncpa [#allocation8], 1

</llo_original>
